<compile_context>
chip_gen: v7x
topology: tpu7x:2x2x1
jax: 0.10.0
libtpu: 0.0.40
codegen_flags: <defaults>
</compile_context>

<pallas_src>
import jax
import jax.numpy as jnp
from jax import lax
from jax.experimental import pallas as pl
from jax.experimental.pallas import tpu as pltpu


def _basic_block1d_kernel(x_ref, w1_ref, w2_ref, o_ref, pad_ref):
    """One (C, B_blk, L) tile of BasicBlock1D.

    x_ref  : (C, B_blk, L)     f32 VMEM  input tile (channels on the free leading axis)
    w1_ref : (C*C*3,)          f32 SMEM  conv1 weight, flat index (co*C + ci)*3 + k
    w2_ref : (C*C*3,)          f32 SMEM  conv2 weight, same flattening
    o_ref  : (C, B_blk, L)     f32 VMEM  output tile
    pad_ref: (C, B_blk, L + 2) f32 VMEM  zero-bordered staging buffer (conv halo)
    """
    C, Bb, L = x_ref.shape

    def conv3(w_ref):
        # 3-tap conv over the zero-padded planes currently staged in pad_ref.
        # ci-outer / co-inner with C persistent accumulators: only 3 tap planes
        # + C accumulators are live at any time (caps vreg pressure).
        acc = [jnp.zeros((Bb, L), jnp.float32) for _ in range(C)]
        for ci in range(C):
            t_m1 = pad_ref[ci, :, pl.ds(0, L)]   # in[l-1] (zero at l == 0)
            t_0 = pad_ref[ci, :, pl.ds(1, L)]    # in[l]
            t_p1 = pad_ref[ci, :, pl.ds(2, L)]   # in[l+1] (zero at l == L-1)
            for co in range(C):
                base = (co * C + ci) * 3
                acc[co] = (acc[co]
                           + w_ref[base + 0] * t_m1
                           + w_ref[base + 1] * t_0
                           + w_ref[base + 2] * t_p1)
        return acc

    # Stage x into the zero-bordered buffer; the borders ARE the convs' zero padding.
    pad_ref[...] = jnp.zeros_like(pad_ref)
    for ci in range(C):
        pad_ref[ci, :, pl.ds(1, L)] = x_ref[ci]

    # conv1 + ReLU, restaged into the same buffer for conv2 (borders stay zero).
    h = conv3(w1_ref)
    for ci in range(C):
        pad_ref[ci, :, pl.ds(1, L)] = jnp.maximum(h[ci], 0.0)

    # conv2 + identity shortcut + ReLU; dense lane-major (B_blk, L) stores per channel.
    y = conv3(w2_ref)
    for co in range(C):
        o_ref[co] = jnp.maximum(y[co] + x_ref[co], 0.0)


def _pick_b_block(B, C, L, budget_bytes=2 << 20):
    """Largest batch block that satisfies the (8,128)/full-dim tiling rule and keeps a
    (C, B_blk, L) f32 tile under ~budget_bytes (so double buffering + scratch fit the
    default scoped-VMEM limits on v5e/v6e/v7x)."""
    if B % 8 != 0:
        return B                      # single block == full dim (always legal)
    per_row = C * L * 4               # bytes per batch row across all channels
    b_blk = max(8, min(B, (budget_bytes // per_row) // 8 * 8))
    while B % b_blk:
        b_blk -= 8
    return b_blk


def basic_block_1d(x, conv1_w, conv2_w, *, b_blk=None):
    """BasicBlock1D forward (stride=1, in_planes == planes, group_norm=False).

    x:       (B, C, L) float32  -- PyTorch NCL layout
    conv1_w: (C, C, 3) float32  -- nn.Conv1d weight (out, in, k)
    conv2_w: (C, C, 3) float32
    returns: (B, C, L) float32
    """
    B, C, L = x.shape
    assert conv1_w.shape == (C, C, 3) and conv2_w.shape == (C, C, 3), (
        "only the identity-shortcut configuration (in_planes == planes, stride=1) "
        "is implemented")

    if b_blk is None:
        b_blk = _pick_b_block(B, C, L)
    assert B % b_blk == 0 and (b_blk == B or b_blk % 8 == 0)

    # (B, C, L) -> (C, B, L): channel planes become contiguous lane-dense (B, L)
    # slabs; keeps in-kernel loads/stores dense and unmasked (layout plumbing only).
    x_t = jnp.transpose(x.astype(jnp.float32), (1, 0, 2))
    w1 = conv1_w.astype(jnp.float32).reshape(-1)
    w2 = conv2_w.astype(jnp.float32).reshape(-1)

    out_t = pl.pallas_call(
        _basic_block1d_kernel,
        out_shape=jax.ShapeDtypeStruct((C, B, L), jnp.float32),
        grid=(B // b_blk,),
        in_specs=[
            pl.BlockSpec((C, b_blk, L), lambda b: (0, b, 0)),      # activation tile
            pl.BlockSpec(memory_space=pltpu.MemorySpace.SMEM),     # conv1 weights (scalars)
            pl.BlockSpec(memory_space=pltpu.MemorySpace.SMEM),     # conv2 weights (scalars)
        ],
        out_specs=pl.BlockSpec((C, b_blk, L), lambda b: (0, b, 0)),
        scratch_shapes=[pltpu.VMEM((C, b_blk, L + 2), jnp.float32)],
        compiler_params=pltpu.CompilerParams(
            dimension_semantics=("parallel",)),
    )(x_t, w1, w2)

    return jnp.transpose(out_t, (1, 0, 2))


def _reference(x, conv1_w, conv2_w):
    """Pure-JAX reference (lax.conv) for correctness check."""
    dn = ("NCH", "OIH", "NCH")
    h = lax.conv_general_dilated(x, conv1_w, window_strides=(1,), padding="SAME",
                                 dimension_numbers=dn)
    h = jnp.maximum(h, 0.0)
    h = lax.conv_general_dilated(h, conv2_w, window_strides=(1,), padding="SAME",
                                 dimension_numbers=dn)
    return jnp.maximum(h + x, 0.0)


if __name__ == "__main__":
    key = jax.random.PRNGKey(0)

    # Case 1: the module's own small shape (in_planes == planes == 4, stride == 1).
    B, C, L = 2, 4, 16
    kx, k1, k2, key = jax.random.split(key, 4)
    x = jax.random.normal(kx, (B, C, L), jnp.float32)
    w1 = jax.random.normal(k1, (C, C, 3), jnp.float32) * 0.2
    w2 = jax.random.normal(k2, (C, C, 3), jnp.float32) * 0.2
    out = jax.block_until_ready(basic_block_1d(x, w1, w2))
    assert out.shape == (B, C, L)
    assert jnp.allclose(out, _reference(x, w1, w2), atol=1e-4, rtol=1e-5), \
        "mismatch vs JAX reference (case 1)"

    # Case 2: exercises the pipelined batch grid (2 steps, b_blk=8) and a
    # non-multiple-of-128 sequence length (halo / masked-lane edges).
    B, C, L = 16, 4, 80
    kx, k1, k2, key = jax.random.split(key, 4)
    x = jax.random.normal(kx, (B, C, L), jnp.float32)
    w1 = jax.random.normal(k1, (C, C, 3), jnp.float32) * 0.2
    w2 = jax.random.normal(k2, (C, C, 3), jnp.float32) * 0.2
    out = jax.block_until_ready(basic_block_1d(x, w1, w2, b_blk=8))
    assert out.shape == (B, C, L)
    assert jnp.allclose(out, _reference(x, w1, w2), atol=1e-4, rtol=1e-5), \
        "mismatch vs JAX reference (case 2)"

    print("KERNEL_OK")
</pallas_src>

<mosaic_0001>
module attributes {stable_mosaic.version = 11 : i64} {
  func.func @_basic_block1d_kernel(%arg0: i32, %arg1: memref<4x2x16xf32, #tpu.memory_space<vmem>>, %arg2: memref<48xf32, #tpu.memory_space<smem>>, %arg3: memref<48xf32, #tpu.memory_space<smem>>, %arg4: memref<4x2x16xf32, #tpu.memory_space<vmem>>, %arg5: memref<4x2x18xf32, #tpu.memory_space<vmem>>) attributes {dimension_semantics = [#tpu.dimension_semantics<parallel>], iteration_bounds = array<i64: 1>, scalar_prefetch = 0 : i64, scratch_operands = 1 : i64, tpu.core_type = #tpu.core_type<tc>, window_params = [{transform_indices = @transform_0, window_bounds = array<i64: 4, 2, 16>}, {transform_indices = @transform_1, window_bounds = array<i64: 48>}, {transform_indices = @transform_2, window_bounds = array<i64: 48>}, {transform_indices = @transform_3, window_bounds = array<i64: 4, 2, 16>}]} {
    %cst = arith.constant 0.000000e+00 : f32
    %0 = vector.broadcast %cst : f32 to vector<4x2x18xf32>
    %c0 = arith.constant 0 : index
    %c0_0 = arith.constant 0 : index
    %c0_1 = arith.constant 0 : index
    %1 = vector.load %arg5[%c0, %c0_0, %c0_1] : memref<4x2x18xf32, #tpu.memory_space<vmem>>, vector<4x2x18xf32>
    tpu.vector_store %arg5[%c0, %c0_0, %c0_1], %0 {strides = array<i32>} : memref<4x2x18xf32, #tpu.memory_space<vmem>>, vector<4x2x18xf32>,
    %c0_2 = arith.constant 0 : index
    %c0_3 = arith.constant 0 : index
    %c0_4 = arith.constant 0 : index
    %2 = vector.load %arg1[%c0_2, %c0_3, %c0_4] : memref<4x2x16xf32, #tpu.memory_space<vmem>>, vector<1x2x16xf32>
    %3 = vector.shape_cast %2 : vector<1x2x16xf32> to vector<2x16xf32>
    %c0_5 = arith.constant 0 : index
    %c0_6 = arith.constant 0 : index
    %c1 = arith.constant 1 : index
    %4 = vector.load %arg5[%c0_5, %c0_6, %c1] : memref<4x2x18xf32, #tpu.memory_space<vmem>>, vector<1x2x16xf32>
    %5 = vector.shape_cast %4 : vector<1x2x16xf32> to vector<2x16xf32>
    %6 = vector.shape_cast %3 : vector<2x16xf32> to vector<1x2x16xf32>
    tpu.vector_store %arg5[%c0_5, %c0_6, %c1], %6 {strides = array<i32>} : memref<4x2x18xf32, #tpu.memory_space<vmem>>, vector<1x2x16xf32>,
    %c1_7 = arith.constant 1 : index
    %c0_8 = arith.constant 0 : index
    %c0_9 = arith.constant 0 : index
    %7 = vector.load %arg1[%c1_7, %c0_8, %c0_9] : memref<4x2x16xf32, #tpu.memory_space<vmem>>, vector<1x2x16xf32>
    %8 = vector.shape_cast %7 : vector<1x2x16xf32> to vector<2x16xf32>
    %c1_10 = arith.constant 1 : index
    %c0_11 = arith.constant 0 : index
    %c1_12 = arith.constant 1 : index
    %9 = vector.load %arg5[%c1_10, %c0_11, %c1_12] : memref<4x2x18xf32, #tpu.memory_space<vmem>>, vector<1x2x16xf32>
    %10 = vector.shape_cast %9 : vector<1x2x16xf32> to vector<2x16xf32>
    %11 = vector.shape_cast %8 : vector<2x16xf32> to vector<1x2x16xf32>
    tpu.vector_store %arg5[%c1_10, %c0_11, %c1_12], %11 {strides = array<i32>} : memref<4x2x18xf32, #tpu.memory_space<vmem>>, vector<1x2x16xf32>,
    %c2 = arith.constant 2 : index
    %c0_13 = arith.constant 0 : index
    %c0_14 = arith.constant 0 : index
    %12 = vector.load %arg1[%c2, %c0_13, %c0_14] : memref<4x2x16xf32, #tpu.memory_space<vmem>>, vector<1x2x16xf32>
    %13 = vector.shape_cast %12 : vector<1x2x16xf32> to vector<2x16xf32>
    %c2_15 = arith.constant 2 : index
    %c0_16 = arith.constant 0 : index
    %c1_17 = arith.constant 1 : index
    %14 = vector.load %arg5[%c2_15, %c0_16, %c1_17] : memref<4x2x18xf32, #tpu.memory_space<vmem>>, vector<1x2x16xf32>
    %15 = vector.shape_cast %14 : vector<1x2x16xf32> to vector<2x16xf32>
    %16 = vector.shape_cast %13 : vector<2x16xf32> to vector<1x2x16xf32>
    tpu.vector_store %arg5[%c2_15, %c0_16, %c1_17], %16 {strides = array<i32>} : memref<4x2x18xf32, #tpu.memory_space<vmem>>, vector<1x2x16xf32>,
    %c3 = arith.constant 3 : index
    %c0_18 = arith.constant 0 : index
    %c0_19 = arith.constant 0 : index
    %17 = vector.load %arg1[%c3, %c0_18, %c0_19] : memref<4x2x16xf32, #tpu.memory_space<vmem>>, vector<1x2x16xf32>
    %18 = vector.shape_cast %17 : vector<1x2x16xf32> to vector<2x16xf32>
    %c3_20 = arith.constant 3 : index
    %c0_21 = arith.constant 0 : index
    %c1_22 = arith.constant 1 : index
    %19 = vector.load %arg5[%c3_20, %c0_21, %c1_22] : memref<4x2x18xf32, #tpu.memory_space<vmem>>, vector<1x2x16xf32>
    %20 = vector.shape_cast %19 : vector<1x2x16xf32> to vector<2x16xf32>
    %21 = vector.shape_cast %18 : vector<2x16xf32> to vector<1x2x16xf32>
    tpu.vector_store %arg5[%c3_20, %c0_21, %c1_22], %21 {strides = array<i32>} : memref<4x2x18xf32, #tpu.memory_space<vmem>>, vector<1x2x16xf32>,
    %cst_23 = arith.constant 0.000000e+00 : f32
    %22 = vector.broadcast %cst_23 : f32 to vector<2x16xf32>
    %cst_24 = arith.constant 0.000000e+00 : f32
    %23 = vector.broadcast %cst_24 : f32 to vector<2x16xf32>
    %cst_25 = arith.constant 0.000000e+00 : f32
    %24 = vector.broadcast %cst_25 : f32 to vector<2x16xf32>
    %cst_26 = arith.constant 0.000000e+00 : f32
    %25 = vector.broadcast %cst_26 : f32 to vector<2x16xf32>
    %c0_27 = arith.constant 0 : index
    %c0_28 = arith.constant 0 : index
    %c0_29 = arith.constant 0 : index
    %26 = vector.load %arg5[%c0_27, %c0_28, %c0_29] : memref<4x2x18xf32, #tpu.memory_space<vmem>>, vector<1x2x16xf32>
    %27 = vector.shape_cast %26 : vector<1x2x16xf32> to vector<2x16xf32>
    %c0_30 = arith.constant 0 : index
    %c0_31 = arith.constant 0 : index
    %c1_32 = arith.constant 1 : index
    %28 = vector.load %arg5[%c0_30, %c0_31, %c1_32] : memref<4x2x18xf32, #tpu.memory_space<vmem>>, vector<1x2x16xf32>
    %29 = vector.shape_cast %28 : vector<1x2x16xf32> to vector<2x16xf32>
    %c0_33 = arith.constant 0 : index
    %c0_34 = arith.constant 0 : index
    %c2_35 = arith.constant 2 : index
    %30 = vector.load %arg5[%c0_33, %c0_34, %c2_35] : memref<4x2x18xf32, #tpu.memory_space<vmem>>, vector<1x2x16xf32>
    %31 = vector.shape_cast %30 : vector<1x2x16xf32> to vector<2x16xf32>
    %c0_36 = arith.constant 0 : index
    %32 = memref.load %arg2[%c0_36] : memref<48xf32, #tpu.memory_space<smem>>
    %33 = vector.broadcast %32 : f32 to vector<2x16xf32>
    %34 = arith.mulf %33, %27 : vector<2x16xf32>
    %35 = arith.addf %22, %34 : vector<2x16xf32>
    %c1_37 = arith.constant 1 : index
    %36 = memref.load %arg2[%c1_37] : memref<48xf32, #tpu.memory_space<smem>>
    %37 = vector.broadcast %36 : f32 to vector<2x16xf32>
    %38 = arith.mulf %37, %29 : vector<2x16xf32>
    %39 = arith.addf %35, %38 : vector<2x16xf32>
    %c2_38 = arith.constant 2 : index
    %40 = memref.load %arg2[%c2_38] : memref<48xf32, #tpu.memory_space<smem>>
    %41 = vector.broadcast %40 : f32 to vector<2x16xf32>
    %42 = arith.mulf %41, %31 : vector<2x16xf32>
    %43 = arith.addf %39, %42 : vector<2x16xf32>
    %c12 = arith.constant 12 : index
    %44 = memref.load %arg2[%c12] : memref<48xf32, #tpu.memory_space<smem>>
    %45 = vector.broadcast %44 : f32 to vector<2x16xf32>
    %46 = arith.mulf %45, %27 : vector<2x16xf32>
    %47 = arith.addf %23, %46 : vector<2x16xf32>
    %c13 = arith.constant 13 : index
    %48 = memref.load %arg2[%c13] : memref<48xf32, #tpu.memory_space<smem>>
    %49 = vector.broadcast %48 : f32 to vector<2x16xf32>
    %50 = arith.mulf %49, %29 : vector<2x16xf32>
    %51 = arith.addf %47, %50 : vector<2x16xf32>
    %c14 = arith.constant 14 : index
    %52 = memref.load %arg2[%c14] : memref<48xf32, #tpu.memory_space<smem>>
    %53 = vector.broadcast %52 : f32 to vector<2x16xf32>
    %54 = arith.mulf %53, %31 : vector<2x16xf32>
    %55 = arith.addf %51, %54 : vector<2x16xf32>
    %c24 = arith.constant 24 : index
    %56 = memref.load %arg2[%c24] : memref<48xf32, #tpu.memory_space<smem>>
    %57 = vector.broadcast %56 : f32 to vector<2x16xf32>
    %58 = arith.mulf %57, %27 : vector<2x16xf32>
    %59 = arith.addf %24, %58 : vector<2x16xf32>
    %c25 = arith.constant 25 : index
    %60 = memref.load %arg2[%c25] : memref<48xf32, #tpu.memory_space<smem>>
    %61 = vector.broadcast %60 : f32 to vector<2x16xf32>
    %62 = arith.mulf %61, %29 : vector<2x16xf32>
    %63 = arith.addf %59, %62 : vector<2x16xf32>
    %c26 = arith.constant 26 : index
    %64 = memref.load %arg2[%c26] : memref<48xf32, #tpu.memory_space<smem>>
    %65 = vector.broadcast %64 : f32 to vector<2x16xf32>
    %66 = arith.mulf %65, %31 : vector<2x16xf32>
    %67 = arith.addf %63, %66 : vector<2x16xf32>
    %c36 = arith.constant 36 : index
    %68 = memref.load %arg2[%c36] : memref<48xf32, #tpu.memory_space<smem>>
    %69 = vector.broadcast %68 : f32 to vector<2x16xf32>
    %70 = arith.mulf %69, %27 : vector<2x16xf32>
    %71 = arith.addf %25, %70 : vector<2x16xf32>
    %c37 = arith.constant 37 : index
    %72 = memref.load %arg2[%c37] : memref<48xf32, #tpu.memory_space<smem>>
    %73 = vector.broadcast %72 : f32 to vector<2x16xf32>
    %74 = arith.mulf %73, %29 : vector<2x16xf32>
    %75 = arith.addf %71, %74 : vector<2x16xf32>
    %c38 = arith.constant 38 : index
    %76 = memref.load %arg2[%c38] : memref<48xf32, #tpu.memory_space<smem>>
    %77 = vector.broadcast %76 : f32 to vector<2x16xf32>
    %78 = arith.mulf %77, %31 : vector<2x16xf32>
    %79 = arith.addf %75, %78 : vector<2x16xf32>
    %c1_39 = arith.constant 1 : index
    %c0_40 = arith.constant 0 : index
    %c0_41 = arith.constant 0 : index
    %80 = vector.load %arg5[%c1_39, %c0_40, %c0_41] : memref<4x2x18xf32, #tpu.memory_space<vmem>>, vector<1x2x16xf32>
    %81 = vector.shape_cast %80 : vector<1x2x16xf32> to vector<2x16xf32>
    %c1_42 = arith.constant 1 : index
    %c0_43 = arith.constant 0 : index
    %c1_44 = arith.constant 1 : index
    %82 = vector.load %arg5[%c1_42, %c0_43, %c1_44] : memref<4x2x18xf32, #tpu.memory_space<vmem>>, vector<1x2x16xf32>
    %83 = vector.shape_cast %82 : vector<1x2x16xf32> to vector<2x16xf32>
    %c1_45 = arith.constant 1 : index
    %c0_46 = arith.constant 0 : index
    %c2_47 = arith.constant 2 : index
    %84 = vector.load %arg5[%c1_45, %c0_46, %c2_47] : memref<4x2x18xf32, #tpu.memory_space<vmem>>, vector<1x2x16xf32>
    %85 = vector.shape_cast %84 : vector<1x2x16xf32> to vector<2x16xf32>
    %c3_48 = arith.constant 3 : index
    %86 = memref.load %arg2[%c3_48] : memref<48xf32, #tpu.memory_space<smem>>
    %87 = vector.broadcast %86 : f32 to vector<2x16xf32>
    %88 = arith.mulf %87, %81 : vector<2x16xf32>
    %89 = arith.addf %43, %88 : vector<2x16xf32>
    %c4 = arith.constant 4 : index
    %90 = memref.load %arg2[%c4] : memref<48xf32, #tpu.memory_space<smem>>
    %91 = vector.broadcast %90 : f32 to vector<2x16xf32>
    %92 = arith.mulf %91, %83 : vector<2x16xf32>
    %93 = arith.addf %89, %92 : vector<2x16xf32>
    %c5 = arith.constant 5 : index
    %94 = memref.load %arg2[%c5] : memref<48xf32, #tpu.memory_space<smem>>
    %95 = vector.broadcast %94 : f32 to vector<2x16xf32>
    %96 = arith.mulf %95, %85 : vector<2x16xf32>
    %97 = arith.addf %93, %96 : vector<2x16xf32>
    %c15 = arith.constant 15 : index
    %98 = memref.load %arg2[%c15] : memref<48xf32, #tpu.memory_space<smem>>
    %99 = vector.broadcast %98 : f32 to vector<2x16xf32>
    %100 = arith.mulf %99, %81 : vector<2x16xf32>
    %101 = arith.addf %55, %100 : vector<2x16xf32>
    %c16 = arith.constant 16 : index
    %102 = memref.load %arg2[%c16] : memref<48xf32, #tpu.memory_space<smem>>
    %103 = vector.broadcast %102 : f32 to vector<2x16xf32>
    %104 = arith.mulf %103, %83 : vector<2x16xf32>
    %105 = arith.addf %101, %104 : vector<2x16xf32>
    %c17 = arith.constant 17 : index
    %106 = memref.load %arg2[%c17] : memref<48xf32, #tpu.memory_space<smem>>
    %107 = vector.broadcast %106 : f32 to vector<2x16xf32>
    %108 = arith.mulf %107, %85 : vector<2x16xf32>
    %109 = arith.addf %105, %108 : vector<2x16xf32>
    %c27 = arith.constant 27 : index
    %110 = memref.load %arg2[%c27] : memref<48xf32, #tpu.memory_space<smem>>
    %111 = vector.broadcast %110 : f32 to vector<2x16xf32>
    %112 = arith.mulf %111, %81 : vector<2x16xf32>
    %113 = arith.addf %67, %112 : vector<2x16xf32>
    %c28 = arith.constant 28 : index
    %114 = memref.load %arg2[%c28] : memref<48xf32, #tpu.memory_space<smem>>
    %115 = vector.broadcast %114 : f32 to vector<2x16xf32>
    %116 = arith.mulf %115, %83 : vector<2x16xf32>
    %117 = arith.addf %113, %116 : vector<2x16xf32>
    %c29 = arith.constant 29 : index
    %118 = memref.load %arg2[%c29] : memref<48xf32, #tpu.memory_space<smem>>
    %119 = vector.broadcast %118 : f32 to vector<2x16xf32>
    %120 = arith.mulf %119, %85 : vector<2x16xf32>
    %121 = arith.addf %117, %120 : vector<2x16xf32>
    %c39 = arith.constant 39 : index
    %122 = memref.load %arg2[%c39] : memref<48xf32, #tpu.memory_space<smem>>
    %123 = vector.broadcast %122 : f32 to vector<2x16xf32>
    %124 = arith.mulf %123, %81 : vector<2x16xf32>
    %125 = arith.addf %79, %124 : vector<2x16xf32>
    %c40 = arith.constant 40 : index
    %126 = memref.load %arg2[%c40] : memref<48xf32, #tpu.memory_space<smem>>
    %127 = vector.broadcast %126 : f32 to vector<2x16xf32>
    %128 = arith.mulf %127, %83 : vector<2x16xf32>
    %129 = arith.addf %125, %128 : vector<2x16xf32>
    %c41 = arith.constant 41 : index
    %130 = memref.load %arg2[%c41] : memref<48xf32, #tpu.memory_space<smem>>
    %131 = vector.broadcast %130 : f32 to vector<2x16xf32>
    %132 = arith.mulf %131, %85 : vector<2x16xf32>
    %133 = arith.addf %129, %132 : vector<2x16xf32>
    %c2_49 = arith.constant 2 : index
    %c0_50 = arith.constant 0 : index
    %c0_51 = arith.constant 0 : index
    %134 = vector.load %arg5[%c2_49, %c0_50, %c0_51] : memref<4x2x18xf32, #tpu.memory_space<vmem>>, vector<1x2x16xf32>
    %135 = vector.shape_cast %134 : vector<1x2x16xf32> to vector<2x16xf32>
    %c2_52 = arith.constant 2 : index
    %c0_53 = arith.constant 0 : index
    %c1_54 = arith.constant 1 : index
    %136 = vector.load %arg5[%c2_52, %c0_53, %c1_54] : memref<4x2x18xf32, #tpu.memory_space<vmem>>, vector<1x2x16xf32>
    %137 = vector.shape_cast %136 : vector<1x2x16xf32> to vector<2x16xf32>
    %c2_55 = arith.constant 2 : index
    %c0_56 = arith.constant 0 : index
    %c2_57 = arith.constant 2 : index
    %138 = vector.load %arg5[%c2_55, %c0_56, %c2_57] : memref<4x2x18xf32, #tpu.memory_space<vmem>>, vector<1x2x16xf32>
    %139 = vector.shape_cast %138 : vector<1x2x16xf32> to vector<2x16xf32>
    %c6 = arith.constant 6 : index
    %140 = memref.load %arg2[%c6] : memref<48xf32, #tpu.memory_space<smem>>
    %141 = vector.broadcast %140 : f32 to vector<2x16xf32>
    %142 = arith.mulf %141, %135 : vector<2x16xf32>
    %143 = arith.addf %97, %142 : vector<2x16xf32>
    %c7 = arith.constant 7 : index
    %144 = memref.load %arg2[%c7] : memref<48xf32, #tpu.memory_space<smem>>
    %145 = vector.broadcast %144 : f32 to vector<2x16xf32>
    %146 = arith.mulf %145, %137 : vector<2x16xf32>
    %147 = arith.addf %143, %146 : vector<2x16xf32>
    %c8 = arith.constant 8 : index
    %148 = memref.load %arg2[%c8] : memref<48xf32, #tpu.memory_space<smem>>
    %149 = vector.broadcast %148 : f32 to vector<2x16xf32>
    %150 = arith.mulf %149, %139 : vector<2x16xf32>
    %151 = arith.addf %147, %150 : vector<2x16xf32>
    %c18 = arith.constant 18 : index
    %152 = memref.load %arg2[%c18] : memref<48xf32, #tpu.memory_space<smem>>
    %153 = vector.broadcast %152 : f32 to vector<2x16xf32>
    %154 = arith.mulf %153, %135 : vector<2x16xf32>
    %155 = arith.addf %109, %154 : vector<2x16xf32>
    %c19 = arith.constant 19 : index
    %156 = memref.load %arg2[%c19] : memref<48xf32, #tpu.memory_space<smem>>
    %157 = vector.broadcast %156 : f32 to vector<2x16xf32>
    %158 = arith.mulf %157, %137 : vector<2x16xf32>
    %159 = arith.addf %155, %158 : vector<2x16xf32>
    %c20 = arith.constant 20 : index
    %160 = memref.load %arg2[%c20] : memref<48xf32, #tpu.memory_space<smem>>
    %161 = vector.broadcast %160 : f32 to vector<2x16xf32>
    %162 = arith.mulf %161, %139 : vector<2x16xf32>
    %163 = arith.addf %159, %162 : vector<2x16xf32>
    %c30 = arith.constant 30 : index
    %164 = memref.load %arg2[%c30] : memref<48xf32, #tpu.memory_space<smem>>
    %165 = vector.broadcast %164 : f32 to vector<2x16xf32>
    %166 = arith.mulf %165, %135 : vector<2x16xf32>
    %167 = arith.addf %121, %166 : vector<2x16xf32>
    %c31 = arith.constant 31 : index
    %168 = memref.load %arg2[%c31] : memref<48xf32, #tpu.memory_space<smem>>
    %169 = vector.broadcast %168 : f32 to vector<2x16xf32>
    %170 = arith.mulf %169, %137 : vector<2x16xf32>
    %171 = arith.addf %167, %170 : vector<2x16xf32>
    %c32 = arith.constant 32 : index
    %172 = memref.load %arg2[%c32] : memref<48xf32, #tpu.memory_space<smem>>
    %173 = vector.broadcast %172 : f32 to vector<2x16xf32>
    %174 = arith.mulf %173, %139 : vector<2x16xf32>
    %175 = arith.addf %171, %174 : vector<2x16xf32>
    %c42 = arith.constant 42 : index
    %176 = memref.load %arg2[%c42] : memref<48xf32, #tpu.memory_space<smem>>
    %177 = vector.broadcast %176 : f32 to vector<2x16xf32>
    %178 = arith.mulf %177, %135 : vector<2x16xf32>
    %179 = arith.addf %133, %178 : vector<2x16xf32>
    %c43 = arith.constant 43 : index
    %180 = memref.load %arg2[%c43] : memref<48xf32, #tpu.memory_space<smem>>
    %181 = vector.broadcast %180 : f32 to vector<2x16xf32>
    %182 = arith.mulf %181, %137 : vector<2x16xf32>
    %183 = arith.addf %179, %182 : vector<2x16xf32>
    %c44 = arith.constant 44 : index
    %184 = memref.load %arg2[%c44] : memref<48xf32, #tpu.memory_space<smem>>
    %185 = vector.broadcast %184 : f32 to vector<2x16xf32>
    %186 = arith.mulf %185, %139 : vector<2x16xf32>
    %187 = arith.addf %183, %186 : vector<2x16xf32>
    %c3_58 = arith.constant 3 : index
    %c0_59 = arith.constant 0 : index
    %c0_60 = arith.constant 0 : index
    %188 = vector.load %arg5[%c3_58, %c0_59, %c0_60] : memref<4x2x18xf32, #tpu.memory_space<vmem>>, vector<1x2x16xf32>
    %189 = vector.shape_cast %188 : vector<1x2x16xf32> to vector<2x16xf32>
    %c3_61 = arith.constant 3 : index
    %c0_62 = arith.constant 0 : index
    %c1_63 = arith.constant 1 : index
    %190 = vector.load %arg5[%c3_61, %c0_62, %c1_63] : memref<4x2x18xf32, #tpu.memory_space<vmem>>, vector<1x2x16xf32>
    %191 = vector.shape_cast %190 : vector<1x2x16xf32> to vector<2x16xf32>
    %c3_64 = arith.constant 3 : index
    %c0_65 = arith.constant 0 : index
    %c2_66 = arith.constant 2 : index
    %192 = vector.load %arg5[%c3_64, %c0_65, %c2_66] : memref<4x2x18xf32, #tpu.memory_space<vmem>>, vector<1x2x16xf32>
    %193 = vector.shape_cast %192 : vector<1x2x16xf32> to vector<2x16xf32>
    %c9 = arith.constant 9 : index
    %194 = memref.load %arg2[%c9] : memref<48xf32, #tpu.memory_space<smem>>
    %195 = vector.broadcast %194 : f32 to vector<2x16xf32>
    %196 = arith.mulf %195, %189 : vector<2x16xf32>
    %197 = arith.addf %151, %196 : vector<2x16xf32>
    %c10 = arith.constant 10 : index
    %198 = memref.load %arg2[%c10] : memref<48xf32, #tpu.memory_space<smem>>
    %199 = vector.broadcast %198 : f32 to vector<2x16xf32>
    %200 = arith.mulf %199, %191 : vector<2x16xf32>
    %201 = arith.addf %197, %200 : vector<2x16xf32>
    %c11 = arith.constant 11 : index
    %202 = memref.load %arg2[%c11] : memref<48xf32, #tpu.memory_space<smem>>
    %203 = vector.broadcast %202 : f32 to vector<2x16xf32>
    %204 = arith.mulf %203, %193 : vector<2x16xf32>
    %205 = arith.addf %201, %204 : vector<2x16xf32>
    %c21 = arith.constant 21 : index
    %206 = memref.load %arg2[%c21] : memref<48xf32, #tpu.memory_space<smem>>
    %207 = vector.broadcast %206 : f32 to vector<2x16xf32>
    %208 = arith.mulf %207, %189 : vector<2x16xf32>
    %209 = arith.addf %163, %208 : vector<2x16xf32>
    %c22 = arith.constant 22 : index
    %210 = memref.load %arg2[%c22] : memref<48xf32, #tpu.memory_space<smem>>
    %211 = vector.broadcast %210 : f32 to vector<2x16xf32>
    %212 = arith.mulf %211, %191 : vector<2x16xf32>
    %213 = arith.addf %209, %212 : vector<2x16xf32>
    %c23 = arith.constant 23 : index
    %214 = memref.load %arg2[%c23] : memref<48xf32, #tpu.memory_space<smem>>
    %215 = vector.broadcast %214 : f32 to vector<2x16xf32>
    %216 = arith.mulf %215, %193 : vector<2x16xf32>
    %217 = arith.addf %213, %216 : vector<2x16xf32>
    %c33 = arith.constant 33 : index
    %218 = memref.load %arg2[%c33] : memref<48xf32, #tpu.memory_space<smem>>
    %219 = vector.broadcast %218 : f32 to vector<2x16xf32>
    %220 = arith.mulf %219, %189 : vector<2x16xf32>
    %221 = arith.addf %175, %220 : vector<2x16xf32>
    %c34 = arith.constant 34 : index
    %222 = memref.load %arg2[%c34] : memref<48xf32, #tpu.memory_space<smem>>
    %223 = vector.broadcast %222 : f32 to vector<2x16xf32>
    %224 = arith.mulf %223, %191 : vector<2x16xf32>
    %225 = arith.addf %221, %224 : vector<2x16xf32>
    %c35 = arith.constant 35 : index
    %226 = memref.load %arg2[%c35] : memref<48xf32, #tpu.memory_space<smem>>
    %227 = vector.broadcast %226 : f32 to vector<2x16xf32>
    %228 = arith.mulf %227, %193 : vector<2x16xf32>
    %229 = arith.addf %225, %228 : vector<2x16xf32>
    %c45 = arith.constant 45 : index
    %230 = memref.load %arg2[%c45] : memref<48xf32, #tpu.memory_space<smem>>
    %231 = vector.broadcast %230 : f32 to vector<2x16xf32>
    %232 = arith.mulf %231, %189 : vector<2x16xf32>
    %233 = arith.addf %187, %232 : vector<2x16xf32>
    %c46 = arith.constant 46 : index
    %234 = memref.load %arg2[%c46] : memref<48xf32, #tpu.memory_space<smem>>
    %235 = vector.broadcast %234 : f32 to vector<2x16xf32>
    %236 = arith.mulf %235, %191 : vector<2x16xf32>
    %237 = arith.addf %233, %236 : vector<2x16xf32>
    %c47 = arith.constant 47 : index
    %238 = memref.load %arg2[%c47] : memref<48xf32, #tpu.memory_space<smem>>
    %239 = vector.broadcast %238 : f32 to vector<2x16xf32>
    %240 = arith.mulf %239, %193 : vector<2x16xf32>
    %241 = arith.addf %237, %240 : vector<2x16xf32>
    %cst_67 = arith.constant 0.000000e+00 : f32
    %242 = vector.broadcast %cst_67 : f32 to vector<2x16xf32>
    %243 = arith.maximumf %205, %242 : vector<2x16xf32>
    %c0_68 = arith.constant 0 : index
    %c0_69 = arith.constant 0 : index
    %c1_70 = arith.constant 1 : index
    %244 = vector.load %arg5[%c0_68, %c0_69, %c1_70] : memref<4x2x18xf32, #tpu.memory_space<vmem>>, vector<1x2x16xf32>
    %245 = vector.shape_cast %244 : vector<1x2x16xf32> to vector<2x16xf32>
    %246 = vector.shape_cast %243 : vector<2x16xf32> to vector<1x2x16xf32>
    tpu.vector_store %arg5[%c0_68, %c0_69, %c1_70], %246 {strides = array<i32>} : memref<4x2x18xf32, #tpu.memory_space<vmem>>, vector<1x2x16xf32>,
    %cst_71 = arith.constant 0.000000e+00 : f32
    %247 = vector.broadcast %cst_71 : f32 to vector<2x16xf32>
    %248 = arith.maximumf %217, %247 : vector<2x16xf32>
    %c1_72 = arith.constant 1 : index
    %c0_73 = arith.constant 0 : index
    %c1_74 = arith.constant 1 : index
    %249 = vector.load %arg5[%c1_72, %c0_73, %c1_74] : memref<4x2x18xf32, #tpu.memory_space<vmem>>, vector<1x2x16xf32>
    %250 = vector.shape_cast %249 : vector<1x2x16xf32> to vector<2x16xf32>
    %251 = vector.shape_cast %248 : vector<2x16xf32> to vector<1x2x16xf32>
    tpu.vector_store %arg5[%c1_72, %c0_73, %c1_74], %251 {strides = array<i32>} : memref<4x2x18xf32, #tpu.memory_space<vmem>>, vector<1x2x16xf32>,
    %cst_75 = arith.constant 0.000000e+00 : f32
    %252 = vector.broadcast %cst_75 : f32 to vector<2x16xf32>
    %253 = arith.maximumf %229, %252 : vector<2x16xf32>
    %c2_76 = arith.constant 2 : index
    %c0_77 = arith.constant 0 : index
    %c1_78 = arith.constant 1 : index
    %254 = vector.load %arg5[%c2_76, %c0_77, %c1_78] : memref<4x2x18xf32, #tpu.memory_space<vmem>>, vector<1x2x16xf32>
    %255 = vector.shape_cast %254 : vector<1x2x16xf32> to vector<2x16xf32>
    %256 = vector.shape_cast %253 : vector<2x16xf32> to vector<1x2x16xf32>
    tpu.vector_store %arg5[%c2_76, %c0_77, %c1_78], %256 {strides = array<i32>} : memref<4x2x18xf32, #tpu.memory_space<vmem>>, vector<1x2x16xf32>,
    %cst_79 = arith.constant 0.000000e+00 : f32
    %257 = vector.broadcast %cst_79 : f32 to vector<2x16xf32>
    %258 = arith.maximumf %241, %257 : vector<2x16xf32>
    %c3_80 = arith.constant 3 : index
    %c0_81 = arith.constant 0 : index
    %c1_82 = arith.constant 1 : index
    %259 = vector.load %arg5[%c3_80, %c0_81, %c1_82] : memref<4x2x18xf32, #tpu.memory_space<vmem>>, vector<1x2x16xf32>
    %260 = vector.shape_cast %259 : vector<1x2x16xf32> to vector<2x16xf32>
    %261 = vector.shape_cast %258 : vector<2x16xf32> to vector<1x2x16xf32>
    tpu.vector_store %arg5[%c3_80, %c0_81, %c1_82], %261 {strides = array<i32>} : memref<4x2x18xf32, #tpu.memory_space<vmem>>, vector<1x2x16xf32>,
    %cst_83 = arith.constant 0.000000e+00 : f32
    %262 = vector.broadcast %cst_83 : f32 to vector<2x16xf32>
    %cst_84 = arith.constant 0.000000e+00 : f32
    %263 = vector.broadcast %cst_84 : f32 to vector<2x16xf32>
    %cst_85 = arith.constant 0.000000e+00 : f32
    %264 = vector.broadcast %cst_85 : f32 to vector<2x16xf32>
    %cst_86 = arith.constant 0.000000e+00 : f32
    %265 = vector.broadcast %cst_86 : f32 to vector<2x16xf32>
    %c0_87 = arith.constant 0 : index
    %c0_88 = arith.constant 0 : index
    %c0_89 = arith.constant 0 : index
    %266 = vector.load %arg5[%c0_87, %c0_88, %c0_89] : memref<4x2x18xf32, #tpu.memory_space<vmem>>, vector<1x2x16xf32>
    %267 = vector.shape_cast %266 : vector<1x2x16xf32> to vector<2x16xf32>
    %c0_90 = arith.constant 0 : index
    %c0_91 = arith.constant 0 : index
    %c1_92 = arith.constant 1 : index
    %268 = vector.load %arg5[%c0_90, %c0_91, %c1_92] : memref<4x2x18xf32, #tpu.memory_space<vmem>>, vector<1x2x16xf32>
    %269 = vector.shape_cast %268 : vector<1x2x16xf32> to vector<2x16xf32>
    %c0_93 = arith.constant 0 : index
    %c0_94 = arith.constant 0 : index
    %c2_95 = arith.constant 2 : index
    %270 = vector.load %arg5[%c0_93, %c0_94, %c2_95] : memref<4x2x18xf32, #tpu.memory_space<vmem>>, vector<1x2x16xf32>
    %271 = vector.shape_cast %270 : vector<1x2x16xf32> to vector<2x16xf32>
    %c0_96 = arith.constant 0 : index
    %272 = memref.load %arg3[%c0_96] : memref<48xf32, #tpu.memory_space<smem>>
    %273 = vector.broadcast %272 : f32 to vector<2x16xf32>
    %274 = arith.mulf %273, %267 : vector<2x16xf32>
    %275 = arith.addf %262, %274 : vector<2x16xf32>
    %c1_97 = arith.constant 1 : index
    %276 = memref.load %arg3[%c1_97] : memref<48xf32, #tpu.memory_space<smem>>
    %277 = vector.broadcast %276 : f32 to vector<2x16xf32>
    %278 = arith.mulf %277, %269 : vector<2x16xf32>
    %279 = arith.addf %275, %278 : vector<2x16xf32>
    %c2_98 = arith.constant 2 : index
    %280 = memref.load %arg3[%c2_98] : memref<48xf32, #tpu.memory_space<smem>>
    %281 = vector.broadcast %280 : f32 to vector<2x16xf32>
    %282 = arith.mulf %281, %271 : vector<2x16xf32>
    %283 = arith.addf %279, %282 : vector<2x16xf32>
    %c12_99 = arith.constant 12 : index
    %284 = memref.load %arg3[%c12_99] : memref<48xf32, #tpu.memory_space<smem>>
    %285 = vector.broadcast %284 : f32 to vector<2x16xf32>
    %286 = arith.mulf %285, %267 : vector<2x16xf32>
    %287 = arith.addf %263, %286 : vector<2x16xf32>
    %c13_100 = arith.constant 13 : index
    %288 = memref.load %arg3[%c13_100] : memref<48xf32, #tpu.memory_space<smem>>
    %289 = vector.broadcast %288 : f32 to vector<2x16xf32>
    %290 = arith.mulf %289, %269 : vector<2x16xf32>
    %291 = arith.addf %287, %290 : vector<2x16xf32>
    %c14_101 = arith.constant 14 : index
    %292 = memref.load %arg3[%c14_101] : memref<48xf32, #tpu.memory_space<smem>>
    %293 = vector.broadcast %292 : f32 to vector<2x16xf32>
    %294 = arith.mulf %293, %271 : vector<2x16xf32>
    %295 = arith.addf %291, %294 : vector<2x16xf32>
    %c24_102 = arith.constant 24 : index
    %296 = memref.load %arg3[%c24_102] : memref<48xf32, #tpu.memory_space<smem>>
    %297 = vector.broadcast %296 : f32 to vector<2x16xf32>
    %298 = arith.mulf %297, %267 : vector<2x16xf32>
    %299 = arith.addf %264, %298 : vector<2x16xf32>
    %c25_103 = arith.constant 25 : index
    %300 = memref.load %arg3[%c25_103] : memref<48xf32, #tpu.memory_space<smem>>
    %301 = vector.broadcast %300 : f32 to vector<2x16xf32>
    %302 = arith.mulf %301, %269 : vector<2x16xf32>
    %303 = arith.addf %299, %302 : vector<2x16xf32>
    %c26_104 = arith.constant 26 : index
    %304 = memref.load %arg3[%c26_104] : memref<48xf32, #tpu.memory_space<smem>>
    %305 = vector.broadcast %304 : f32 to vector<2x16xf32>
    %306 = arith.mulf %305, %271 : vector<2x16xf32>
    %307 = arith.addf %303, %306 : vector<2x16xf32>
    %c36_105 = arith.constant 36 : index
    %308 = memref.load %arg3[%c36_105] : memref<48xf32, #tpu.memory_space<smem>>
    %309 = vector.broadcast %308 : f32 to vector<2x16xf32>
    %310 = arith.mulf %309, %267 : vector<2x16xf32>
    %311 = arith.addf %265, %310 : vector<2x16xf32>
    %c37_106 = arith.constant 37 : index
    %312 = memref.load %arg3[%c37_106] : memref<48xf32, #tpu.memory_space<smem>>
    %313 = vector.broadcast %312 : f32 to vector<2x16xf32>
    %314 = arith.mulf %313, %269 : vector<2x16xf32>
    %315 = arith.addf %311, %314 : vector<2x16xf32>
    %c38_107 = arith.constant 38 : index
    %316 = memref.load %arg3[%c38_107] : memref<48xf32, #tpu.memory_space<smem>>
    %317 = vector.broadcast %316 : f32 to vector<2x16xf32>
    %318 = arith.mulf %317, %271 : vector<2x16xf32>
    %319 = arith.addf %315, %318 : vector<2x16xf32>
    %c1_108 = arith.constant 1 : index
    %c0_109 = arith.constant 0 : index
    %c0_110 = arith.constant 0 : index
    %320 = vector.load %arg5[%c1_108, %c0_109, %c0_110] : memref<4x2x18xf32, #tpu.memory_space<vmem>>, vector<1x2x16xf32>
    %321 = vector.shape_cast %320 : vector<1x2x16xf32> to vector<2x16xf32>
    %c1_111 = arith.constant 1 : index
    %c0_112 = arith.constant 0 : index
    %c1_113 = arith.constant 1 : index
    %322 = vector.load %arg5[%c1_111, %c0_112, %c1_113] : memref<4x2x18xf32, #tpu.memory_space<vmem>>, vector<1x2x16xf32>
    %323 = vector.shape_cast %322 : vector<1x2x16xf32> to vector<2x16xf32>
    %c1_114 = arith.constant 1 : index
    %c0_115 = arith.constant 0 : index
    %c2_116 = arith.constant 2 : index
    %324 = vector.load %arg5[%c1_114, %c0_115, %c2_116] : memref<4x2x18xf32, #tpu.memory_space<vmem>>, vector<1x2x16xf32>
    %325 = vector.shape_cast %324 : vector<1x2x16xf32> to vector<2x16xf32>
    %c3_117 = arith.constant 3 : index
    %326 = memref.load %arg3[%c3_117] : memref<48xf32, #tpu.memory_space<smem>>
    %327 = vector.broadcast %326 : f32 to vector<2x16xf32>
    %328 = arith.mulf %327, %321 : vector<2x16xf32>
    %329 = arith.addf %283, %328 : vector<2x16xf32>
    %c4_118 = arith.constant 4 : index
    %330 = memref.load %arg3[%c4_118] : memref<48xf32, #tpu.memory_space<smem>>
    %331 = vector.broadcast %330 : f32 to vector<2x16xf32>
    %332 = arith.mulf %331, %323 : vector<2x16xf32>
    %333 = arith.addf %329, %332 : vector<2x16xf32>
    %c5_119 = arith.constant 5 : index
    %334 = memref.load %arg3[%c5_119] : memref<48xf32, #tpu.memory_space<smem>>
    %335 = vector.broadcast %334 : f32 to vector<2x16xf32>
    %336 = arith.mulf %335, %325 : vector<2x16xf32>
    %337 = arith.addf %333, %336 : vector<2x16xf32>
    %c15_120 = arith.constant 15 : index
    %338 = memref.load %arg3[%c15_120] : memref<48xf32, #tpu.memory_space<smem>>
    %339 = vector.broadcast %338 : f32 to vector<2x16xf32>
    %340 = arith.mulf %339, %321 : vector<2x16xf32>
    %341 = arith.addf %295, %340 : vector<2x16xf32>
    %c16_121 = arith.constant 16 : index
    %342 = memref.load %arg3[%c16_121] : memref<48xf32, #tpu.memory_space<smem>>
    %343 = vector.broadcast %342 : f32 to vector<2x16xf32>
    %344 = arith.mulf %343, %323 : vector<2x16xf32>
    %345 = arith.addf %341, %344 : vector<2x16xf32>
    %c17_122 = arith.constant 17 : index
    %346 = memref.load %arg3[%c17_122] : memref<48xf32, #tpu.memory_space<smem>>
    %347 = vector.broadcast %346 : f32 to vector<2x16xf32>
    %348 = arith.mulf %347, %325 : vector<2x16xf32>
    %349 = arith.addf %345, %348 : vector<2x16xf32>
    %c27_123 = arith.constant 27 : index
    %350 = memref.load %arg3[%c27_123] : memref<48xf32, #tpu.memory_space<smem>>
    %351 = vector.broadcast %350 : f32 to vector<2x16xf32>
    %352 = arith.mulf %351, %321 : vector<2x16xf32>
    %353 = arith.addf %307, %352 : vector<2x16xf32>
    %c28_124 = arith.constant 28 : index
    %354 = memref.load %arg3[%c28_124] : memref<48xf32, #tpu.memory_space<smem>>
    %355 = vector.broadcast %354 : f32 to vector<2x16xf32>
    %356 = arith.mulf %355, %323 : vector<2x16xf32>
    %357 = arith.addf %353, %356 : vector<2x16xf32>
    %c29_125 = arith.constant 29 : index
    %358 = memref.load %arg3[%c29_125] : memref<48xf32, #tpu.memory_space<smem>>
    %359 = vector.broadcast %358 : f32 to vector<2x16xf32>
    %360 = arith.mulf %359, %325 : vector<2x16xf32>
    %361 = arith.addf %357, %360 : vector<2x16xf32>
    %c39_126 = arith.constant 39 : index
    %362 = memref.load %arg3[%c39_126] : memref<48xf32, #tpu.memory_space<smem>>
    %363 = vector.broadcast %362 : f32 to vector<2x16xf32>
    %364 = arith.mulf %363, %321 : vector<2x16xf32>
    %365 = arith.addf %319, %364 : vector<2x16xf32>
    %c40_127 = arith.constant 40 : index
    %366 = memref.load %arg3[%c40_127] : memref<48xf32, #tpu.memory_space<smem>>
    %367 = vector.broadcast %366 : f32 to vector<2x16xf32>
    %368 = arith.mulf %367, %323 : vector<2x16xf32>
    %369 = arith.addf %365, %368 : vector<2x16xf32>
    %c41_128 = arith.constant 41 : index
    %370 = memref.load %arg3[%c41_128] : memref<48xf32, #tpu.memory_space<smem>>
    %371 = vector.broadcast %370 : f32 to vector<2x16xf32>
    %372 = arith.mulf %371, %325 : vector<2x16xf32>
    %373 = arith.addf %369, %372 : vector<2x16xf32>
    %c2_129 = arith.constant 2 : index
    %c0_130 = arith.constant 0 : index
    %c0_131 = arith.constant 0 : index
    %374 = vector.load %arg5[%c2_129, %c0_130, %c0_131] : memref<4x2x18xf32, #tpu.memory_space<vmem>>, vector<1x2x16xf32>
    %375 = vector.shape_cast %374 : vector<1x2x16xf32> to vector<2x16xf32>
    %c2_132 = arith.constant 2 : index
    %c0_133 = arith.constant 0 : index
    %c1_134 = arith.constant 1 : index
    %376 = vector.load %arg5[%c2_132, %c0_133, %c1_134] : memref<4x2x18xf32, #tpu.memory_space<vmem>>, vector<1x2x16xf32>
    %377 = vector.shape_cast %376 : vector<1x2x16xf32> to vector<2x16xf32>
    %c2_135 = arith.constant 2 : index
    %c0_136 = arith.constant 0 : index
    %c2_137 = arith.constant 2 : index
    %378 = vector.load %arg5[%c2_135, %c0_136, %c2_137] : memref<4x2x18xf32, #tpu.memory_space<vmem>>, vector<1x2x16xf32>
    %379 = vector.shape_cast %378 : vector<1x2x16xf32> to vector<2x16xf32>
    %c6_138 = arith.constant 6 : index
    %380 = memref.load %arg3[%c6_138] : memref<48xf32, #tpu.memory_space<smem>>
    %381 = vector.broadcast %380 : f32 to vector<2x16xf32>
    %382 = arith.mulf %381, %375 : vector<2x16xf32>
    %383 = arith.addf %337, %382 : vector<2x16xf32>
    %c7_139 = arith.constant 7 : index
    %384 = memref.load %arg3[%c7_139] : memref<48xf32, #tpu.memory_space<smem>>
    %385 = vector.broadcast %384 : f32 to vector<2x16xf32>
    %386 = arith.mulf %385, %377 : vector<2x16xf32>
    %387 = arith.addf %383, %386 : vector<2x16xf32>
    %c8_140 = arith.constant 8 : index
    %388 = memref.load %arg3[%c8_140] : memref<48xf32, #tpu.memory_space<smem>>
    %389 = vector.broadcast %388 : f32 to vector<2x16xf32>
    %390 = arith.mulf %389, %379 : vector<2x16xf32>
    %391 = arith.addf %387, %390 : vector<2x16xf32>
    %c18_141 = arith.constant 18 : index
    %392 = memref.load %arg3[%c18_141] : memref<48xf32, #tpu.memory_space<smem>>
    %393 = vector.broadcast %392 : f32 to vector<2x16xf32>
    %394 = arith.mulf %393, %375 : vector<2x16xf32>
    %395 = arith.addf %349, %394 : vector<2x16xf32>
    %c19_142 = arith.constant 19 : index
    %396 = memref.load %arg3[%c19_142] : memref<48xf32, #tpu.memory_space<smem>>
    %397 = vector.broadcast %396 : f32 to vector<2x16xf32>
    %398 = arith.mulf %397, %377 : vector<2x16xf32>
    %399 = arith.addf %395, %398 : vector<2x16xf32>
    %c20_143 = arith.constant 20 : index
    %400 = memref.load %arg3[%c20_143] : memref<48xf32, #tpu.memory_space<smem>>
    %401 = vector.broadcast %400 : f32 to vector<2x16xf32>
    %402 = arith.mulf %401, %379 : vector<2x16xf32>
    %403 = arith.addf %399, %402 : vector<2x16xf32>
    %c30_144 = arith.constant 30 : index
    %404 = memref.load %arg3[%c30_144] : memref<48xf32, #tpu.memory_space<smem>>
    %405 = vector.broadcast %404 : f32 to vector<2x16xf32>
    %406 = arith.mulf %405, %375 : vector<2x16xf32>
    %407 = arith.addf %361, %406 : vector<2x16xf32>
    %c31_145 = arith.constant 31 : index
    %408 = memref.load %arg3[%c31_145] : memref<48xf32, #tpu.memory_space<smem>>
    %409 = vector.broadcast %408 : f32 to vector<2x16xf32>
    %410 = arith.mulf %409, %377 : vector<2x16xf32>
    %411 = arith.addf %407, %410 : vector<2x16xf32>
    %c32_146 = arith.constant 32 : index
    %412 = memref.load %arg3[%c32_146] : memref<48xf32, #tpu.memory_space<smem>>
    %413 = vector.broadcast %412 : f32 to vector<2x16xf32>
    %414 = arith.mulf %413, %379 : vector<2x16xf32>
    %415 = arith.addf %411, %414 : vector<2x16xf32>
    %c42_147 = arith.constant 42 : index
    %416 = memref.load %arg3[%c42_147] : memref<48xf32, #tpu.memory_space<smem>>
    %417 = vector.broadcast %416 : f32 to vector<2x16xf32>
    %418 = arith.mulf %417, %375 : vector<2x16xf32>
    %419 = arith.addf %373, %418 : vector<2x16xf32>
    %c43_148 = arith.constant 43 : index
    %420 = memref.load %arg3[%c43_148] : memref<48xf32, #tpu.memory_space<smem>>
    %421 = vector.broadcast %420 : f32 to vector<2x16xf32>
    %422 = arith.mulf %421, %377 : vector<2x16xf32>
    %423 = arith.addf %419, %422 : vector<2x16xf32>
    %c44_149 = arith.constant 44 : index
    %424 = memref.load %arg3[%c44_149] : memref<48xf32, #tpu.memory_space<smem>>
    %425 = vector.broadcast %424 : f32 to vector<2x16xf32>
    %426 = arith.mulf %425, %379 : vector<2x16xf32>
    %427 = arith.addf %423, %426 : vector<2x16xf32>
    %c3_150 = arith.constant 3 : index
    %c0_151 = arith.constant 0 : index
    %c0_152 = arith.constant 0 : index
    %428 = vector.load %arg5[%c3_150, %c0_151, %c0_152] : memref<4x2x18xf32, #tpu.memory_space<vmem>>, vector<1x2x16xf32>
    %429 = vector.shape_cast %428 : vector<1x2x16xf32> to vector<2x16xf32>
    %c3_153 = arith.constant 3 : index
    %c0_154 = arith.constant 0 : index
    %c1_155 = arith.constant 1 : index
    %430 = vector.load %arg5[%c3_153, %c0_154, %c1_155] : memref<4x2x18xf32, #tpu.memory_space<vmem>>, vector<1x2x16xf32>
    %431 = vector.shape_cast %430 : vector<1x2x16xf32> to vector<2x16xf32>
    %c3_156 = arith.constant 3 : index
    %c0_157 = arith.constant 0 : index
    %c2_158 = arith.constant 2 : index
    %432 = vector.load %arg5[%c3_156, %c0_157, %c2_158] : memref<4x2x18xf32, #tpu.memory_space<vmem>>, vector<1x2x16xf32>
    %433 = vector.shape_cast %432 : vector<1x2x16xf32> to vector<2x16xf32>
    %c9_159 = arith.constant 9 : index
    %434 = memref.load %arg3[%c9_159] : memref<48xf32, #tpu.memory_space<smem>>
    %435 = vector.broadcast %434 : f32 to vector<2x16xf32>
    %436 = arith.mulf %435, %429 : vector<2x16xf32>
    %437 = arith.addf %391, %436 : vector<2x16xf32>
    %c10_160 = arith.constant 10 : index
    %438 = memref.load %arg3[%c10_160] : memref<48xf32, #tpu.memory_space<smem>>
    %439 = vector.broadcast %438 : f32 to vector<2x16xf32>
    %440 = arith.mulf %439, %431 : vector<2x16xf32>
    %441 = arith.addf %437, %440 : vector<2x16xf32>
    %c11_161 = arith.constant 11 : index
    %442 = memref.load %arg3[%c11_161] : memref<48xf32, #tpu.memory_space<smem>>
    %443 = vector.broadcast %442 : f32 to vector<2x16xf32>
    %444 = arith.mulf %443, %433 : vector<2x16xf32>
    %445 = arith.addf %441, %444 : vector<2x16xf32>
    %c21_162 = arith.constant 21 : index
    %446 = memref.load %arg3[%c21_162] : memref<48xf32, #tpu.memory_space<smem>>
    %447 = vector.broadcast %446 : f32 to vector<2x16xf32>
    %448 = arith.mulf %447, %429 : vector<2x16xf32>
    %449 = arith.addf %403, %448 : vector<2x16xf32>
    %c22_163 = arith.constant 22 : index
    %450 = memref.load %arg3[%c22_163] : memref<48xf32, #tpu.memory_space<smem>>
    %451 = vector.broadcast %450 : f32 to vector<2x16xf32>
    %452 = arith.mulf %451, %431 : vector<2x16xf32>
    %453 = arith.addf %449, %452 : vector<2x16xf32>
    %c23_164 = arith.constant 23 : index
    %454 = memref.load %arg3[%c23_164] : memref<48xf32, #tpu.memory_space<smem>>
    %455 = vector.broadcast %454 : f32 to vector<2x16xf32>
    %456 = arith.mulf %455, %433 : vector<2x16xf32>
    %457 = arith.addf %453, %456 : vector<2x16xf32>
    %c33_165 = arith.constant 33 : index
    %458 = memref.load %arg3[%c33_165] : memref<48xf32, #tpu.memory_space<smem>>
    %459 = vector.broadcast %458 : f32 to vector<2x16xf32>
    %460 = arith.mulf %459, %429 : vector<2x16xf32>
    %461 = arith.addf %415, %460 : vector<2x16xf32>
    %c34_166 = arith.constant 34 : index
    %462 = memref.load %arg3[%c34_166] : memref<48xf32, #tpu.memory_space<smem>>
    %463 = vector.broadcast %462 : f32 to vector<2x16xf32>
    %464 = arith.mulf %463, %431 : vector<2x16xf32>
    %465 = arith.addf %461, %464 : vector<2x16xf32>
    %c35_167 = arith.constant 35 : index
    %466 = memref.load %arg3[%c35_167] : memref<48xf32, #tpu.memory_space<smem>>
    %467 = vector.broadcast %466 : f32 to vector<2x16xf32>
    %468 = arith.mulf %467, %433 : vector<2x16xf32>
    %469 = arith.addf %465, %468 : vector<2x16xf32>
    %c45_168 = arith.constant 45 : index
    %470 = memref.load %arg3[%c45_168] : memref<48xf32, #tpu.memory_space<smem>>
    %471 = vector.broadcast %470 : f32 to vector<2x16xf32>
    %472 = arith.mulf %471, %429 : vector<2x16xf32>
    %473 = arith.addf %427, %472 : vector<2x16xf32>
    %c46_169 = arith.constant 46 : index
    %474 = memref.load %arg3[%c46_169] : memref<48xf32, #tpu.memory_space<smem>>
    %475 = vector.broadcast %474 : f32 to vector<2x16xf32>
    %476 = arith.mulf %475, %431 : vector<2x16xf32>
    %477 = arith.addf %473, %476 : vector<2x16xf32>
    %c47_170 = arith.constant 47 : index
    %478 = memref.load %arg3[%c47_170] : memref<48xf32, #tpu.memory_space<smem>>
    %479 = vector.broadcast %478 : f32 to vector<2x16xf32>
    %480 = arith.mulf %479, %433 : vector<2x16xf32>
    %481 = arith.addf %477, %480 : vector<2x16xf32>
    %c0_171 = arith.constant 0 : index
    %c0_172 = arith.constant 0 : index
    %c0_173 = arith.constant 0 : index
    %482 = vector.load %arg1[%c0_171, %c0_172, %c0_173] : memref<4x2x16xf32, #tpu.memory_space<vmem>>, vector<1x2x16xf32>
    %483 = vector.shape_cast %482 : vector<1x2x16xf32> to vector<2x16xf32>
    %484 = arith.addf %445, %483 : vector<2x16xf32>
    %cst_174 = arith.constant 0.000000e+00 : f32
    %485 = vector.broadcast %cst_174 : f32 to vector<2x16xf32>
    %486 = arith.maximumf %484, %485 : vector<2x16xf32>
    %c0_175 = arith.constant 0 : index
    %c0_176 = arith.constant 0 : index
    %c0_177 = arith.constant 0 : index
    %487 = vector.load %arg4[%c0_175, %c0_176, %c0_177] : memref<4x2x16xf32, #tpu.memory_space<vmem>>, vector<1x2x16xf32>
    %488 = vector.shape_cast %487 : vector<1x2x16xf32> to vector<2x16xf32>
    %489 = vector.shape_cast %486 : vector<2x16xf32> to vector<1x2x16xf32>
    tpu.vector_store %arg4[%c0_175, %c0_176, %c0_177], %489 {strides = array<i32>} : memref<4x2x16xf32, #tpu.memory_space<vmem>>, vector<1x2x16xf32>,
    %c1_178 = arith.constant 1 : index
    %c0_179 = arith.constant 0 : index
    %c0_180 = arith.constant 0 : index
    %490 = vector.load %arg1[%c1_178, %c0_179, %c0_180] : memref<4x2x16xf32, #tpu.memory_space<vmem>>, vector<1x2x16xf32>
    %491 = vector.shape_cast %490 : vector<1x2x16xf32> to vector<2x16xf32>
    %492 = arith.addf %457, %491 : vector<2x16xf32>
    %cst_181 = arith.constant 0.000000e+00 : f32
    %493 = vector.broadcast %cst_181 : f32 to vector<2x16xf32>
    %494 = arith.maximumf %492, %493 : vector<2x16xf32>
    %c1_182 = arith.constant 1 : index
    %c0_183 = arith.constant 0 : index
    %c0_184 = arith.constant 0 : index
    %495 = vector.load %arg4[%c1_182, %c0_183, %c0_184] : memref<4x2x16xf32, #tpu.memory_space<vmem>>, vector<1x2x16xf32>
    %496 = vector.shape_cast %495 : vector<1x2x16xf32> to vector<2x16xf32>
    %497 = vector.shape_cast %494 : vector<2x16xf32> to vector<1x2x16xf32>
    tpu.vector_store %arg4[%c1_182, %c0_183, %c0_184], %497 {strides = array<i32>} : memref<4x2x16xf32, #tpu.memory_space<vmem>>, vector<1x2x16xf32>,
    %c2_185 = arith.constant 2 : index
    %c0_186 = arith.constant 0 : index
    %c0_187 = arith.constant 0 : index
    %498 = vector.load %arg1[%c2_185, %c0_186, %c0_187] : memref<4x2x16xf32, #tpu.memory_space<vmem>>, vector<1x2x16xf32>
    %499 = vector.shape_cast %498 : vector<1x2x16xf32> to vector<2x16xf32>
    %500 = arith.addf %469, %499 : vector<2x16xf32>
    %cst_188 = arith.constant 0.000000e+00 : f32
    %501 = vector.broadcast %cst_188 : f32 to vector<2x16xf32>
    %502 = arith.maximumf %500, %501 : vector<2x16xf32>
    %c2_189 = arith.constant 2 : index
    %c0_190 = arith.constant 0 : index
    %c0_191 = arith.constant 0 : index
    %503 = vector.load %arg4[%c2_189, %c0_190, %c0_191] : memref<4x2x16xf32, #tpu.memory_space<vmem>>, vector<1x2x16xf32>
    %504 = vector.shape_cast %503 : vector<1x2x16xf32> to vector<2x16xf32>
    %505 = vector.shape_cast %502 : vector<2x16xf32> to vector<1x2x16xf32>
    tpu.vector_store %arg4[%c2_189, %c0_190, %c0_191], %505 {strides = array<i32>} : memref<4x2x16xf32, #tpu.memory_space<vmem>>, vector<1x2x16xf32>,
    %c3_192 = arith.constant 3 : index
    %c0_193 = arith.constant 0 : index
    %c0_194 = arith.constant 0 : index
    %506 = vector.load %arg1[%c3_192, %c0_193, %c0_194] : memref<4x2x16xf32, #tpu.memory_space<vmem>>, vector<1x2x16xf32>
    %507 = vector.shape_cast %506 : vector<1x2x16xf32> to vector<2x16xf32>
    %508 = arith.addf %481, %507 : vector<2x16xf32>
    %cst_195 = arith.constant 0.000000e+00 : f32
    %509 = vector.broadcast %cst_195 : f32 to vector<2x16xf32>
    %510 = arith.maximumf %508, %509 : vector<2x16xf32>
    %c3_196 = arith.constant 3 : index
    %c0_197 = arith.constant 0 : index
    %c0_198 = arith.constant 0 : index
    %511 = vector.load %arg4[%c3_196, %c0_197, %c0_198] : memref<4x2x16xf32, #tpu.memory_space<vmem>>, vector<1x2x16xf32>
    %512 = vector.shape_cast %511 : vector<1x2x16xf32> to vector<2x16xf32>
    %513 = vector.shape_cast %510 : vector<2x16xf32> to vector<1x2x16xf32>
    tpu.vector_store %arg4[%c3_196, %c0_197, %c0_198], %513 {strides = array<i32>} : memref<4x2x16xf32, #tpu.memory_space<vmem>>, vector<1x2x16xf32>,
    return
  }
  func.func @transform_0(%arg0: i32) -> (i32, i32, i32) {
    %c0_i32 = arith.constant 0 : i32
    %c0_i32_0 = arith.constant 0 : i32
    %c0_i32_1 = arith.constant 0 : i32
    return %c0_i32, %arg0, %c0_i32_0 : i32, i32, i32
  }
  func.func @transform_1(%arg0: i32) -> i32 {
    %c0_i32 = arith.constant 0 : i32
    %c0_i32_0 = arith.constant 0 : i32
    return %c0_i32 : i32
  }
  func.func @transform_2(%arg0: i32) -> i32 {
    %c0_i32 = arith.constant 0 : i32
    %c0_i32_0 = arith.constant 0 : i32
    return %c0_i32 : i32
  }
  func.func @transform_3(%arg0: i32) -> (i32, i32, i32) {
    %c0_i32 = arith.constant 0 : i32
    %c0_i32_0 = arith.constant 0 : i32
    %c0_i32_1 = arith.constant 0 : i32
    return %c0_i32, %arg0, %c0_i32_0 : i32, i32, i32
  }
}

</mosaic_0001>

<llo_original>
// kernel: tpu_custom_call.1
$region0: #{tpu_custom_call.1}
  #allocation0 [shape = 'u32[]', space=smem, size = 0x4, offset = 0x4, fixed_abs, tag = 'smem constant byte address 0x4 - core index']
  #allocation1 [shape = 'u32[144,128]{1,0:T(1,128)}', space=vmem, size = 0x12000, scoped, tag = 'internal scratch']
  #allocation2 [shape = 'f32[4,2,18]{2,1,0:T(2,128)}', space=vmem, size = 0x1000, scoped, tag = 'scratch operand']
  %s0 = inlined_call_operand.hbm [shape: f32[4,2,16], index: 0, kind: input, shape index: {}]
  %s1 = inlined_call_operand.vmem [shape: f32[48], index: 1, kind: input, shape index: {}]
  %s2 = inlined_call_operand.vmem [shape: f32[48], index: 2, kind: input, shape index: {}]
  %s3 = inlined_call_operand.hbm [shape: f32[4,2,16], index: 3, kind: output, shape index: {}]
  %s4 = sld [smem:[#allocation0]]
  $region34: #{tpu_custom_call.1} parent=0
    _
  %s6 = ssub.s32 1, %s4
  %s7 = scalar_select 0, %s6, %s4
  $region1: #{tpu_custom_call.1} parent=0
    #allocation3 [shape = 'u8[4096]{0}', space=vmem, size = 0x1000, scoped, tag = 'input window, operand 0, single buffered']
    #allocation4 [shape = 's32[1]{0}', space=sflag, size = 0x4, scoped, tag = 'scoped memory for tpu_custom_call.1']
    #allocation5 [shape = 's32[1]{0}', space=sflag, size = 0x4, scoped, tag = 'scoped memory for tpu_custom_call.1']
    #allocation6 [shape = 's32[1]{0}', space=sflag, size = 0x4, scoped, tag = 'scoped memory for tpu_custom_call.1']
    #allocation7 [shape = 'u8[512]{0}', space=smem, size = 0x200, scoped, tag = 'input window, operand 1, single buffered']
    #allocation8 [shape = 'u8[512]{0}', space=smem, size = 0x200, scoped, tag = 'input window, operand 2, single buffered']
    #allocation9 [shape = 's32[1]{0}', space=sflag, size = 0x4, scoped, tag = 'scoped memory for tpu_custom_call.1']
    #allocation10 [shape = 'u8[4096]{0}', space=vmem, size = 0x1000, scoped, tag = 'output window, operand 0, single buffered']
    %8 = vsyncpa [#allocation4], 0
    %9 = vsyncpa [#allocation6], 0
    %10 = vsyncpa [#allocation9], 0
    %11 = vsyncpa [#allocation5], 0
    // Predicated region
    $region2: #{tpu_custom_call.1} parent=1 // pred_check
      _
    $region3: #{tpu_custom_call.1} parent=1 // pred_check_branch
      %13 = sbr.rel (0) target = $region5
    $region4: #{tpu_custom_call.1} parent=1 // pred_region
      %s15 = ssub.s32 128, 128
      %16 = vsyncadd [#allocation4], %s15
      %s17 = sshll.u32 [#allocation3], 4
      %s18 = int_to_ptr.vmem [resolvable:$true] %s17
      %23 = dma.hbm_to_vmem [thread:$0]  %s0, 128, %s18, [#allocation4], 32, 32, 2
    $region5: #{tpu_custom_call.1} parent=1 // pred_fallthru
      _
    // Predicated region
    $region6: #{tpu_custom_call.1} parent=1 // pred_check
      _
    $region7: #{tpu_custom_call.1} parent=1 // pred_check_branch
      %25 = sbr.rel (0) target = $region9
    $region8: #{tpu_custom_call.1} parent=1 // pred_region
      %s27 = ssub.s32 16, 16
      %28 = vsyncadd [#allocation6], %s27
      %s30 = sshll.u32 %s1, 4
      %s31 = int_to_ptr.vmem [resolvable:$true] %s30
      %33 = dma.vmem_to_smem %s31, 16, [#allocation7], [#allocation6]
    $region9: #{tpu_custom_call.1} parent=1 // pred_fallthru
      _
    // Predicated region
    $region10: #{tpu_custom_call.1} parent=1 // pred_check
      _
    $region11: #{tpu_custom_call.1} parent=1 // pred_check_branch
      %35 = sbr.rel (0) target = $region13
    $region12: #{tpu_custom_call.1} parent=1 // pred_region
      %s37 = ssub.s32 16, 16
      %38 = vsyncadd [#allocation9], %s37
      %s40 = sshll.u32 %s2, 4
      %s41 = int_to_ptr.vmem [resolvable:$true] %s40
      %43 = dma.vmem_to_smem %s41, 16, [#allocation8], [#allocation9]
    $region13: #{tpu_custom_call.1} parent=1 // pred_fallthru
      _
    // Predicated region
    $region14: #{tpu_custom_call.1} parent=1 // pred_check
      _
    $region15: #{tpu_custom_call.1} parent=1 // pred_check_branch
      %45 = sbr.rel (0) target = $region17
    $region16: #{tpu_custom_call.1} parent=1 // pred_region
      %46 = dma.done [#allocation4], 128
    $region17: #{tpu_custom_call.1} parent=1 // pred_fallthru
      _
    // Predicated region
    $region18: #{tpu_custom_call.1} parent=1 // pred_check
      _
    $region19: #{tpu_custom_call.1} parent=1 // pred_check_branch
      %48 = sbr.rel (0) target = $region21
    $region20: #{tpu_custom_call.1} parent=1 // pred_region
      %49 = dma.done [#allocation6], 16
    $region21: #{tpu_custom_call.1} parent=1 // pred_fallthru
      _
    // Predicated region
    $region22: #{tpu_custom_call.1} parent=1 // pred_check
      _
    $region23: #{tpu_custom_call.1} parent=1 // pred_check_branch
      %51 = sbr.rel (0) target = $region25
    $region24: #{tpu_custom_call.1} parent=1 // pred_region
      %52 = dma.done [#allocation9], 16
    $region25: #{tpu_custom_call.1} parent=1 // pred_fallthru
      _
    %53 = sfence
    %vm54 = vcmask 140288
    %55 = vst.msk [vmem:[#allocation2] sm:$0x3] %vm54, 0.0
    %56 = vst.msk [vmem:[#allocation2 + $0x2] sm:$0x3] %vm54, 0.0
    %57 = vst.msk [vmem:[#allocation2 + $0x4] sm:$0x3] %vm54, 0.0
    %58 = vst.msk [vmem:[#allocation2 + $0x6] sm:$0x3] %vm54, 0.0
    %v59 = vld [vmem:[#allocation3] sm:$0x3]
    %61 = vrot.lane.b32.xlu0 %v59, 1
    %v62 = vpop.permute.xlu0 %61
    %vm64 = vcmask 132104
    %65 = vst.msk [vmem:[#allocation2] sm:$0x3] %vm64, %v62
    %s66 = scalar_lea.vmem [#allocation3], 2
    %v67 = vld [vmem:[%s66] sm:$0x3]
    %69 = vrot.lane.b32.xlu0 %v67, 1
    %v70 = vpop.permute.xlu0 %69
    %s72 = scalar_lea.vmem [#allocation2], 2
    %73 = vst.msk [vmem:[%s72] sm:$0x3] %vm64, %v70
    %s74 = scalar_lea.vmem [#allocation3], 4
    %v75 = vld [vmem:[%s74] sm:$0x3]
    %77 = vrot.lane.b32.xlu0 %v75, 1
    %v78 = vpop.permute.xlu0 %77
    %s80 = scalar_lea.vmem [#allocation2], 4
    %81 = vst.msk [vmem:[%s80] sm:$0x3] %vm64, %v78
    %s82 = scalar_lea.vmem [#allocation3], 6
    %v83 = vld [vmem:[%s82] sm:$0x3]
    %85 = vrot.lane.b32.xlu0 %v83, 1
    %v86 = vpop.permute.xlu0 %85
    %s88 = scalar_lea.vmem [#allocation2], 6
    %89 = vst.msk [vmem:[%s88] sm:$0x3] %vm64, %v86
    %v90 = vld [vmem:[#allocation2] sm:$0x3]
    %s91 = sld [smem:[#allocation7]]
    %v92 = vstv %s91
    %v93 = vmul.f32 %v92, %v90
    %v94 = vadd.f32 %v93, 0.0
    %s95 = sld [smem:[#allocation7 + $0x1]]
    %v96 = vstv %s95
    %v97 = vmul.f32 %v96, %v90
    %99 = vrot.lane.b32.xlu0 %v97, 127
    %v100 = vpop.permute.xlu0 %99
    %v102 = vadd.f32 %v94, %v100
    %s103 = sld [smem:[#allocation7 + $0x2]]
    %v104 = vstv %s103
    %v105 = vmul.f32 %v104, %v90
    %107 = vrot.lane.b32.xlu0 %v105, 126
    %v108 = vpop.permute.xlu0 %107
    %v110 = vadd.f32 %v102, %v108
    %s111 = sld [smem:[#allocation7 + $0xc]]
    %v112 = vstv %s111
    %v113 = vmul.f32 %v112, %v90
    %v114 = vadd.f32 %v113, 0.0
    %s115 = sld [smem:[#allocation7 + $0xd]]
    %v116 = vstv %s115
    %v117 = vmul.f32 %v116, %v90
    %119 = vrot.lane.b32.xlu0 %v117, 127
    %v120 = vpop.permute.xlu0 %119
    %v122 = vadd.f32 %v114, %v120
    %s123 = sld [smem:[#allocation7 + $0xe]]
    %v124 = vstv %s123
    %v125 = vmul.f32 %v124, %v90
    %127 = vrot.lane.b32.xlu0 %v125, 126
    %v128 = vpop.permute.xlu0 %127
    %v130 = vadd.f32 %v122, %v128
    %s131 = sld [smem:[#allocation7 + $0x18]]
    %v132 = vstv %s131
    %v133 = vmul.f32 %v132, %v90
    %v134 = vadd.f32 %v133, 0.0
    %s135 = sld [smem:[#allocation7 + $0x19]]
    %v136 = vstv %s135
    %v137 = vmul.f32 %v136, %v90
    %139 = vrot.lane.b32.xlu0 %v137, 127
    %v140 = vpop.permute.xlu0 %139
    %v142 = vadd.f32 %v134, %v140
    %s143 = sld [smem:[#allocation7 + $0x1a]]
    %v144 = vstv %s143
    %v145 = vmul.f32 %v144, %v90
    %147 = vrot.lane.b32.xlu0 %v145, 126
    %v148 = vpop.permute.xlu0 %147
    %v150 = vadd.f32 %v142, %v148
    %s151 = sld [smem:[#allocation7 + $0x24]]
    %v152 = vstv %s151
    %v153 = vmul.f32 %v152, %v90
    %v154 = vadd.f32 %v153, 0.0
    %s155 = sld [smem:[#allocation7 + $0x25]]
    %v156 = vstv %s155
    %v157 = vmul.f32 %v156, %v90
    %159 = vrot.lane.b32.xlu0 %v157, 127
    %v160 = vpop.permute.xlu0 %159
    %v162 = vadd.f32 %v154, %v160
    %s163 = sld [smem:[#allocation7 + $0x26]]
    %v164 = vstv %s163
    %v165 = vmul.f32 %v164, %v90
    %167 = vrot.lane.b32.xlu0 %v165, 126
    %v168 = vpop.permute.xlu0 %167
    %v170 = vadd.f32 %v162, %v168
    %v171 = vld [vmem:[%s72] sm:$0x3]
    %s172 = sld [smem:[#allocation7 + $0x3]]
    %v173 = vstv %s172
    %v174 = vmul.f32 %v173, %v171
    %v175 = vadd.f32 %v110, %v174
    %s176 = sld [smem:[#allocation7 + $0x4]]
    %v177 = vstv %s176
    %v178 = vmul.f32 %v177, %v171
    %180 = vrot.lane.b32.xlu0 %v178, 127
    %v181 = vpop.permute.xlu0 %180
    %v183 = vadd.f32 %v175, %v181
    %s184 = sld [smem:[#allocation7 + $0x5]]
    %v185 = vstv %s184
    %v186 = vmul.f32 %v185, %v171
    %188 = vrot.lane.b32.xlu0 %v186, 126
    %v189 = vpop.permute.xlu0 %188
    %v191 = vadd.f32 %v183, %v189
    %s192 = sld [smem:[#allocation7 + $0xf]]
    %v193 = vstv %s192
    %v194 = vmul.f32 %v193, %v171
    %v195 = vadd.f32 %v130, %v194
    %s196 = sld [smem:[#allocation7 + $0x10]]
    %v197 = vstv %s196
    %v198 = vmul.f32 %v197, %v171
    %200 = vrot.lane.b32.xlu0 %v198, 127
    %v201 = vpop.permute.xlu0 %200
    %v203 = vadd.f32 %v195, %v201
    %s204 = sld [smem:[#allocation7 + $0x11]]
    %v205 = vstv %s204
    %v206 = vmul.f32 %v205, %v171
    %208 = vrot.lane.b32.xlu0 %v206, 126
    %v209 = vpop.permute.xlu0 %208
    %v211 = vadd.f32 %v203, %v209
    %s212 = sld [smem:[#allocation7 + $0x1b]]
    %v213 = vstv %s212
    %v214 = vmul.f32 %v213, %v171
    %v215 = vadd.f32 %v150, %v214
    %s216 = sld [smem:[#allocation7 + $0x1c]]
    %v217 = vstv %s216
    %v218 = vmul.f32 %v217, %v171
    %220 = vrot.lane.b32.xlu0 %v218, 127
    %v221 = vpop.permute.xlu0 %220
    %v223 = vadd.f32 %v215, %v221
    %s224 = sld [smem:[#allocation7 + $0x1d]]
    %v225 = vstv %s224
    %v226 = vmul.f32 %v225, %v171
    %228 = vrot.lane.b32.xlu0 %v226, 126
    %v229 = vpop.permute.xlu0 %228
    %v231 = vadd.f32 %v223, %v229
    %s232 = sld [smem:[#allocation7 + $0x27]]
    %v233 = vstv %s232
    %v234 = vmul.f32 %v233, %v171
    %v235 = vadd.f32 %v170, %v234
    %s236 = sld [smem:[#allocation7 + $0x28]]
    %v237 = vstv %s236
    %v238 = vmul.f32 %v237, %v171
    %240 = vrot.lane.b32.xlu0 %v238, 127
    %v241 = vpop.permute.xlu0 %240
    %v243 = vadd.f32 %v235, %v241
    %s244 = sld [smem:[#allocation7 + $0x29]]
    %v245 = vstv %s244
    %v246 = vmul.f32 %v245, %v171
    %248 = vrot.lane.b32.xlu0 %v246, 126
    %v249 = vpop.permute.xlu0 %248
    %v251 = vadd.f32 %v243, %v249
    %v252 = vld [vmem:[%s80] sm:$0x3]
    %s253 = sld [smem:[#allocation7 + $0x6]]
    %v254 = vstv %s253
    %v255 = vmul.f32 %v254, %v252
    %v256 = vadd.f32 %v191, %v255
    %s257 = sld [smem:[#allocation7 + $0x7]]
    %v258 = vstv %s257
    %v259 = vmul.f32 %v258, %v252
    %261 = vrot.lane.b32.xlu0 %v259, 127
    %v262 = vpop.permute.xlu0 %261
    %v264 = vadd.f32 %v256, %v262
    %s265 = sld [smem:[#allocation7 + $0x8]]
    %v266 = vstv %s265
    %v267 = vmul.f32 %v266, %v252
    %269 = vrot.lane.b32.xlu0 %v267, 126
    %v270 = vpop.permute.xlu0 %269
    %v272 = vadd.f32 %v264, %v270
    %s273 = sld [smem:[#allocation7 + $0x12]]
    %v274 = vstv %s273
    %v275 = vmul.f32 %v274, %v252
    %v276 = vadd.f32 %v211, %v275
    %s277 = sld [smem:[#allocation7 + $0x13]]
    %v278 = vstv %s277
    %v279 = vmul.f32 %v278, %v252
    %281 = vrot.lane.b32.xlu0 %v279, 127
    %v282 = vpop.permute.xlu0 %281
    %v284 = vadd.f32 %v276, %v282
    %s285 = sld [smem:[#allocation7 + $0x14]]
    %v286 = vstv %s285
    %v287 = vmul.f32 %v286, %v252
    %289 = vrot.lane.b32.xlu0 %v287, 126
    %v290 = vpop.permute.xlu0 %289
    %v292 = vadd.f32 %v284, %v290
    %s293 = sld [smem:[#allocation7 + $0x1e]]
    %v294 = vstv %s293
    %v295 = vmul.f32 %v294, %v252
    %v296 = vadd.f32 %v231, %v295
    %s297 = sld [smem:[#allocation7 + $0x1f]]
    %v298 = vstv %s297
    %v299 = vmul.f32 %v298, %v252
    %301 = vrot.lane.b32.xlu0 %v299, 127
    %v302 = vpop.permute.xlu0 %301
    %v304 = vadd.f32 %v296, %v302
    %s305 = sld [smem:[#allocation7 + $0x20]]
    %v306 = vstv %s305
    %v307 = vmul.f32 %v306, %v252
    %309 = vrot.lane.b32.xlu0 %v307, 126
    %v310 = vpop.permute.xlu0 %309
    %v312 = vadd.f32 %v304, %v310
    %s313 = sld [smem:[#allocation7 + $0x2a]]
    %v314 = vstv %s313
    %v315 = vmul.f32 %v314, %v252
    %v316 = vadd.f32 %v251, %v315
    %s317 = sld [smem:[#allocation7 + $0x2b]]
    %v318 = vstv %s317
    %v319 = vmul.f32 %v318, %v252
    %321 = vrot.lane.b32.xlu0 %v319, 127
    %v322 = vpop.permute.xlu0 %321
    %v324 = vadd.f32 %v316, %v322
    %s325 = sld [smem:[#allocation7 + $0x2c]]
    %v326 = vstv %s325
    %v327 = vmul.f32 %v326, %v252
    %329 = vrot.lane.b32.xlu0 %v327, 126
    %v330 = vpop.permute.xlu0 %329
    %v332 = vadd.f32 %v324, %v330
    %v333 = vld [vmem:[%s88] sm:$0x3]
    %s334 = sld [smem:[#allocation7 + $0x9]]
    %v335 = vstv %s334
    %v336 = vmul.f32 %v335, %v333
    %v337 = vadd.f32 %v272, %v336
    %s338 = sld [smem:[#allocation7 + $0xa]]
    %v339 = vstv %s338
    %v340 = vmul.f32 %v339, %v333
    %342 = vrot.lane.b32.xlu0 %v340, 127
    %v343 = vpop.permute.xlu0 %342
    %v345 = vadd.f32 %v337, %v343
    %s346 = sld [smem:[#allocation7 + $0xb]]
    %v347 = vstv %s346
    %v348 = vmul.f32 %v347, %v333
    %350 = vrot.lane.b32.xlu0 %v348, 126
    %v351 = vpop.permute.xlu0 %350
    %v353 = vadd.f32 %v345, %v351
    %s354 = sld [smem:[#allocation7 + $0x15]]
    %v355 = vstv %s354
    %v356 = vmul.f32 %v355, %v333
    %v357 = vadd.f32 %v292, %v356
    %s358 = sld [smem:[#allocation7 + $0x16]]
    %v359 = vstv %s358
    %v360 = vmul.f32 %v359, %v333
    %362 = vrot.lane.b32.xlu0 %v360, 127
    %v363 = vpop.permute.xlu0 %362
    %v365 = vadd.f32 %v357, %v363
    %s366 = sld [smem:[#allocation7 + $0x17]]
    %v367 = vstv %s366
    %v368 = vmul.f32 %v367, %v333
    %370 = vrot.lane.b32.xlu0 %v368, 126
    %v371 = vpop.permute.xlu0 %370
    %v373 = vadd.f32 %v365, %v371
    %s374 = sld [smem:[#allocation7 + $0x21]]
    %v375 = vstv %s374
    %v376 = vmul.f32 %v375, %v333
    %v377 = vadd.f32 %v312, %v376
    %s378 = sld [smem:[#allocation7 + $0x22]]
    %v379 = vstv %s378
    %v380 = vmul.f32 %v379, %v333
    %382 = vrot.lane.b32.xlu0 %v380, 127
    %v383 = vpop.permute.xlu0 %382
    %v385 = vadd.f32 %v377, %v383
    %s386 = sld [smem:[#allocation7 + $0x23]]
    %v387 = vstv %s386
    %v388 = vmul.f32 %v387, %v333
    %390 = vrot.lane.b32.xlu0 %v388, 126
    %v391 = vpop.permute.xlu0 %390
    %v393 = vadd.f32 %v385, %v391
    %s394 = sld [smem:[#allocation7 + $0x2d]]
    %v395 = vstv %s394
    %v396 = vmul.f32 %v395, %v333
    %v397 = vadd.f32 %v332, %v396
    %s398 = sld [smem:[#allocation7 + $0x2e]]
    %v399 = vstv %s398
    %v400 = vmul.f32 %v399, %v333
    %402 = vrot.lane.b32.xlu0 %v400, 127
    %v403 = vpop.permute.xlu0 %402
    %v405 = vadd.f32 %v397, %v403
    %s406 = sld [smem:[#allocation7 + $0x2f]]
    %v407 = vstv %s406
    %v408 = vmul.f32 %v407, %v333
    %410 = vrot.lane.b32.xlu0 %v408, 126
    %v411 = vpop.permute.xlu0 %410
    %v413 = vadd.f32 %v405, %v411
    %v414 = vmax.f32 %v353, 0.0
    %416 = vrot.lane.b32.xlu0 %v414, 1
    %v417 = vpop.permute.xlu0 %416
    %419 = vst.msk [vmem:[#allocation2] sm:$0x3] %vm64, %v417
    %v420 = vmax.f32 %v373, 0.0
    %422 = vrot.lane.b32.xlu0 %v420, 1
    %v423 = vpop.permute.xlu0 %422
    %425 = vst.msk [vmem:[%s72] sm:$0x3] %vm64, %v423
    %v426 = vmax.f32 %v393, 0.0
    %428 = vrot.lane.b32.xlu0 %v426, 1
    %v429 = vpop.permute.xlu0 %428
    %431 = vst.msk [vmem:[%s80] sm:$0x3] %vm64, %v429
    %v432 = vmax.f32 %v413, 0.0
    %434 = vrot.lane.b32.xlu0 %v432, 1
    %v435 = vpop.permute.xlu0 %434
    %437 = vst.msk [vmem:[%s88] sm:$0x3] %vm64, %v435
    %v438 = vld [vmem:[#allocation2] sm:$0x3]
    %s439 = sld [smem:[#allocation8]]
    %v440 = vstv %s439
    %v441 = vmul.f32 %v440, %v438
    %v442 = vadd.f32 %v441, 0.0
    %s443 = sld [smem:[#allocation8 + $0x1]]
    %v444 = vstv %s443
    %v445 = vmul.f32 %v444, %v438
    %447 = vrot.lane.b32.xlu0 %v445, 127
    %v448 = vpop.permute.xlu0 %447
    %v450 = vadd.f32 %v442, %v448
    %s451 = sld [smem:[#allocation8 + $0x2]]
    %v452 = vstv %s451
    %v453 = vmul.f32 %v452, %v438
    %455 = vrot.lane.b32.xlu0 %v453, 126
    %v456 = vpop.permute.xlu0 %455
    %v458 = vadd.f32 %v450, %v456
    %s459 = sld [smem:[#allocation8 + $0xc]]
    %v460 = vstv %s459
    %v461 = vmul.f32 %v460, %v438
    %v462 = vadd.f32 %v461, 0.0
    %s463 = sld [smem:[#allocation8 + $0xd]]
    %v464 = vstv %s463
    %v465 = vmul.f32 %v464, %v438
    %467 = vrot.lane.b32.xlu0 %v465, 127
    %v468 = vpop.permute.xlu0 %467
    %v470 = vadd.f32 %v462, %v468
    %s471 = sld [smem:[#allocation8 + $0xe]]
    %v472 = vstv %s471
    %v473 = vmul.f32 %v472, %v438
    %475 = vrot.lane.b32.xlu0 %v473, 126
    %v476 = vpop.permute.xlu0 %475
    %v478 = vadd.f32 %v470, %v476
    %s479 = sld [smem:[#allocation8 + $0x18]]
    %v480 = vstv %s479
    %v481 = vmul.f32 %v480, %v438
    %v482 = vadd.f32 %v481, 0.0
    %s483 = sld [smem:[#allocation8 + $0x19]]
    %v484 = vstv %s483
    %v485 = vmul.f32 %v484, %v438
    %487 = vrot.lane.b32.xlu0 %v485, 127
    %v488 = vpop.permute.xlu0 %487
    %v490 = vadd.f32 %v482, %v488
    %s491 = sld [smem:[#allocation8 + $0x1a]]
    %v492 = vstv %s491
    %v493 = vmul.f32 %v492, %v438
    %495 = vrot.lane.b32.xlu0 %v493, 126
    %v496 = vpop.permute.xlu0 %495
    %v498 = vadd.f32 %v490, %v496
    %s499 = sld [smem:[#allocation8 + $0x24]]
    %v500 = vstv %s499
    %v501 = vmul.f32 %v500, %v438
    %v502 = vadd.f32 %v501, 0.0
    %s503 = sld [smem:[#allocation8 + $0x25]]
    %v504 = vstv %s503
    %v505 = vmul.f32 %v504, %v438
    %507 = vrot.lane.b32.xlu0 %v505, 127
    %v508 = vpop.permute.xlu0 %507
    %v510 = vadd.f32 %v502, %v508
    %s511 = sld [smem:[#allocation8 + $0x26]]
    %v512 = vstv %s511
    %v513 = vmul.f32 %v512, %v438
    %515 = vrot.lane.b32.xlu0 %v513, 126
    %v516 = vpop.permute.xlu0 %515
    %v518 = vadd.f32 %v510, %v516
    %v519 = vld [vmem:[%s72] sm:$0x3]
    %s520 = sld [smem:[#allocation8 + $0x3]]
    %v521 = vstv %s520
    %v522 = vmul.f32 %v521, %v519
    %v523 = vadd.f32 %v458, %v522
    %s524 = sld [smem:[#allocation8 + $0x4]]
    %v525 = vstv %s524
    %v526 = vmul.f32 %v525, %v519
    %528 = vrot.lane.b32.xlu0 %v526, 127
    %v529 = vpop.permute.xlu0 %528
    %v531 = vadd.f32 %v523, %v529
    %s532 = sld [smem:[#allocation8 + $0x5]]
    %v533 = vstv %s532
    %v534 = vmul.f32 %v533, %v519
    %536 = vrot.lane.b32.xlu0 %v534, 126
    %v537 = vpop.permute.xlu0 %536
    %v539 = vadd.f32 %v531, %v537
    %s540 = sld [smem:[#allocation8 + $0xf]]
    %v541 = vstv %s540
    %v542 = vmul.f32 %v541, %v519
    %v543 = vadd.f32 %v478, %v542
    %s544 = sld [smem:[#allocation8 + $0x10]]
    %v545 = vstv %s544
    %v546 = vmul.f32 %v545, %v519
    %548 = vrot.lane.b32.xlu0 %v546, 127
    %v549 = vpop.permute.xlu0 %548
    %v551 = vadd.f32 %v543, %v549
    %s552 = sld [smem:[#allocation8 + $0x11]]
    %v553 = vstv %s552
    %v554 = vmul.f32 %v553, %v519
    %556 = vrot.lane.b32.xlu0 %v554, 126
    %v557 = vpop.permute.xlu0 %556
    %v559 = vadd.f32 %v551, %v557
    %s560 = sld [smem:[#allocation8 + $0x1b]]
    %v561 = vstv %s560
    %v562 = vmul.f32 %v561, %v519
    %v563 = vadd.f32 %v498, %v562
    %s564 = sld [smem:[#allocation8 + $0x1c]]
    %v565 = vstv %s564
    %v566 = vmul.f32 %v565, %v519
    %568 = vrot.lane.b32.xlu0 %v566, 127
    %v569 = vpop.permute.xlu0 %568
    %v571 = vadd.f32 %v563, %v569
    %s572 = sld [smem:[#allocation8 + $0x1d]]
    %v573 = vstv %s572
    %v574 = vmul.f32 %v573, %v519
    %576 = vrot.lane.b32.xlu0 %v574, 126
    %v577 = vpop.permute.xlu0 %576
    %v579 = vadd.f32 %v571, %v577
    %s580 = sld [smem:[#allocation8 + $0x27]]
    %v581 = vstv %s580
    %v582 = vmul.f32 %v581, %v519
    %v583 = vadd.f32 %v518, %v582
    %s584 = sld [smem:[#allocation8 + $0x28]]
    %v585 = vstv %s584
    %v586 = vmul.f32 %v585, %v519
    %588 = vrot.lane.b32.xlu0 %v586, 127
    %v589 = vpop.permute.xlu0 %588
    %v591 = vadd.f32 %v583, %v589
    %s592 = sld [smem:[#allocation8 + $0x29]]
    %v593 = vstv %s592
    %v594 = vmul.f32 %v593, %v519
    %596 = vrot.lane.b32.xlu0 %v594, 126
    %v597 = vpop.permute.xlu0 %596
    %v599 = vadd.f32 %v591, %v597
    %v600 = vld [vmem:[%s80] sm:$0x3]
    %s601 = sld [smem:[#allocation8 + $0x6]]
    %v602 = vstv %s601
    %v603 = vmul.f32 %v602, %v600
    %v604 = vadd.f32 %v539, %v603
    %s605 = sld [smem:[#allocation8 + $0x7]]
    %v606 = vstv %s605
    %v607 = vmul.f32 %v606, %v600
    %609 = vrot.lane.b32.xlu0 %v607, 127
    %v610 = vpop.permute.xlu0 %609
    %v612 = vadd.f32 %v604, %v610
    %s613 = sld [smem:[#allocation8 + $0x8]]
    %v614 = vstv %s613
    %v615 = vmul.f32 %v614, %v600
    %617 = vrot.lane.b32.xlu0 %v615, 126
    %v618 = vpop.permute.xlu0 %617
    %v620 = vadd.f32 %v612, %v618
    %s621 = sld [smem:[#allocation8 + $0x12]]
    %v622 = vstv %s621
    %v623 = vmul.f32 %v622, %v600
    %v624 = vadd.f32 %v559, %v623
    %s625 = sld [smem:[#allocation8 + $0x13]]
    %v626 = vstv %s625
    %v627 = vmul.f32 %v626, %v600
    %629 = vrot.lane.b32.xlu0 %v627, 127
    %v630 = vpop.permute.xlu0 %629
    %v632 = vadd.f32 %v624, %v630
    %s633 = sld [smem:[#allocation8 + $0x14]]
    %v634 = vstv %s633
    %v635 = vmul.f32 %v634, %v600
    %637 = vrot.lane.b32.xlu0 %v635, 126
    %v638 = vpop.permute.xlu0 %637
    %v640 = vadd.f32 %v632, %v638
    %s641 = sld [smem:[#allocation8 + $0x1e]]
    %v642 = vstv %s641
    %v643 = vmul.f32 %v642, %v600
    %v644 = vadd.f32 %v579, %v643
    %s645 = sld [smem:[#allocation8 + $0x1f]]
    %v646 = vstv %s645
    %v647 = vmul.f32 %v646, %v600
    %649 = vrot.lane.b32.xlu0 %v647, 127
    %v650 = vpop.permute.xlu0 %649
    %v652 = vadd.f32 %v644, %v650
    %s653 = sld [smem:[#allocation8 + $0x20]]
    %v654 = vstv %s653
    %v655 = vmul.f32 %v654, %v600
    %657 = vrot.lane.b32.xlu0 %v655, 126
    %v658 = vpop.permute.xlu0 %657
    %v660 = vadd.f32 %v652, %v658
    %s661 = sld [smem:[#allocation8 + $0x2a]]
    %v662 = vstv %s661
    %v663 = vmul.f32 %v662, %v600
    %v664 = vadd.f32 %v599, %v663
    %s665 = sld [smem:[#allocation8 + $0x2b]]
    %v666 = vstv %s665
    %v667 = vmul.f32 %v666, %v600
    %669 = vrot.lane.b32.xlu0 %v667, 127
    %v670 = vpop.permute.xlu0 %669
    %v672 = vadd.f32 %v664, %v670
    %s673 = sld [smem:[#allocation8 + $0x2c]]
    %v674 = vstv %s673
    %v675 = vmul.f32 %v674, %v600
    %677 = vrot.lane.b32.xlu0 %v675, 126
    %v678 = vpop.permute.xlu0 %677
    %v680 = vadd.f32 %v672, %v678
    %v681 = vld [vmem:[%s88] sm:$0x3]
    %s682 = sld [smem:[#allocation8 + $0x9]]
    %v683 = vstv %s682
    %v684 = vmul.f32 %v683, %v681
    %v685 = vadd.f32 %v620, %v684
    %s686 = sld [smem:[#allocation8 + $0xa]]
    %v687 = vstv %s686
    %v688 = vmul.f32 %v687, %v681
    %690 = vrot.lane.b32.xlu0 %v688, 127
    %v691 = vpop.permute.xlu0 %690
    %v693 = vadd.f32 %v685, %v691
    %s694 = sld [smem:[#allocation8 + $0xb]]
    %v695 = vstv %s694
    %v696 = vmul.f32 %v695, %v681
    %698 = vrot.lane.b32.xlu0 %v696, 126
    %v699 = vpop.permute.xlu0 %698
    %v701 = vadd.f32 %v693, %v699
    %s702 = sld [smem:[#allocation8 + $0x15]]
    %v703 = vstv %s702
    %v704 = vmul.f32 %v703, %v681
    %v705 = vadd.f32 %v640, %v704
    %s706 = sld [smem:[#allocation8 + $0x16]]
    %v707 = vstv %s706
    %v708 = vmul.f32 %v707, %v681
    %710 = vrot.lane.b32.xlu0 %v708, 127
    %v711 = vpop.permute.xlu0 %710
    %v713 = vadd.f32 %v705, %v711
    %s714 = sld [smem:[#allocation8 + $0x17]]
    %v715 = vstv %s714
    %v716 = vmul.f32 %v715, %v681
    %718 = vrot.lane.b32.xlu0 %v716, 126
    %v719 = vpop.permute.xlu0 %718
    %v721 = vadd.f32 %v713, %v719
    %s722 = sld [smem:[#allocation8 + $0x21]]
    %v723 = vstv %s722
    %v724 = vmul.f32 %v723, %v681
    %v725 = vadd.f32 %v660, %v724
    %s726 = sld [smem:[#allocation8 + $0x22]]
    %v727 = vstv %s726
    %v728 = vmul.f32 %v727, %v681
    %730 = vrot.lane.b32.xlu0 %v728, 127
    %v731 = vpop.permute.xlu0 %730
    %v733 = vadd.f32 %v725, %v731
    %s734 = sld [smem:[#allocation8 + $0x23]]
    %v735 = vstv %s734
    %v736 = vmul.f32 %v735, %v681
    %738 = vrot.lane.b32.xlu0 %v736, 126
    %v739 = vpop.permute.xlu0 %738
    %v741 = vadd.f32 %v733, %v739
    %s742 = sld [smem:[#allocation8 + $0x2d]]
    %v743 = vstv %s742
    %v744 = vmul.f32 %v743, %v681
    %v745 = vadd.f32 %v680, %v744
    %s746 = sld [smem:[#allocation8 + $0x2e]]
    %v747 = vstv %s746
    %v748 = vmul.f32 %v747, %v681
    %750 = vrot.lane.b32.xlu0 %v748, 127
    %v751 = vpop.permute.xlu0 %750
    %v753 = vadd.f32 %v745, %v751
    %s754 = sld [smem:[#allocation8 + $0x2f]]
    %v755 = vstv %s754
    %v756 = vmul.f32 %v755, %v681
    %758 = vrot.lane.b32.xlu0 %v756, 126
    %v759 = vpop.permute.xlu0 %758
    %v761 = vadd.f32 %v753, %v759
    %v762 = vld [vmem:[#allocation3] sm:$0x3]
    %v763 = vadd.f32 %v701, %v762
    %v764 = vmax.f32 %v763, 0.0
    %vm765 = vcmask 123904
    %766 = vst.msk [vmem:[#allocation10] sm:$0x3] %vm765, %v764
    %v767 = vld [vmem:[%s66] sm:$0x3]
    %v768 = vadd.f32 %v721, %v767
    %v769 = vmax.f32 %v768, 0.0
    %s770 = scalar_lea.vmem [#allocation10], 2
    %771 = vst.msk [vmem:[%s770] sm:$0x3] %vm765, %v769
    %v772 = vld [vmem:[%s74] sm:$0x3]
    %v773 = vadd.f32 %v741, %v772
    %v774 = vmax.f32 %v773, 0.0
    %s775 = scalar_lea.vmem [#allocation10], 4
    %776 = vst.msk [vmem:[%s775] sm:$0x3] %vm765, %v774
    %v777 = vld [vmem:[%s82] sm:$0x3]
    %v778 = vadd.f32 %v761, %v777
    %v779 = vmax.f32 %v778, 0.0
    %s780 = scalar_lea.vmem [#allocation10], 6
    %781 = vst.msk [vmem:[%s780] sm:$0x3] %vm765, %v779
    // Predicated region
    $region26: #{tpu_custom_call.1} parent=1 // pred_check
      _
    $region27: #{tpu_custom_call.1} parent=1 // pred_check_branch
      %783 = sbr.rel (0) target = $region29
    $region28: #{tpu_custom_call.1} parent=1 // pred_region
      %s785 = ssub.s32 128, 128
      %786 = vsyncadd [#allocation5], %s785
      %s787 = sshll.u32 [#allocation10], 4
      %s788 = int_to_ptr.vmem [resolvable:$true] %s787
      %793 = dma.vmem_to_hbm [thread:$0]  %s788, 128, %s3, [#allocation5], 32, 32, 2
    $region29: #{tpu_custom_call.1} parent=1 // pred_fallthru
      _
    // Predicated region
    $region30: #{tpu_custom_call.1} parent=1 // pred_check
      _
    $region31: #{tpu_custom_call.1} parent=1 // pred_check_branch
      %795 = sbr.rel (0) target = $region33
    $region32: #{tpu_custom_call.1} parent=1 // pred_region
      %796 = dma.done [#allocation5], 128
    $region33: #{tpu_custom_call.1} parent=1 // pred_fallthru
      _
    %797 = vsyncpa [#allocation4], 1
    %798 = vsyncpa [#allocation5], 1
    %799 = vsyncpa [#allocation6], 1
    %800 = vsyncpa [#allocation9], 1

</llo_original>
